<compile_context>
chip_gen: v7x
topology: tpu7x:2x2x1
jax: 0.10.0
libtpu: 0.0.40
codegen_flags: <defaults>
</compile_context>

<pallas_src>
import jax
import jax.numpy as jnp
from jax import lax
from jax.experimental import pallas as pl
from jax.experimental.pallas import tpu as pltpu

# ---- module hyper-parameters (AttentivePooling defaults: dim_head=32, heads=8)
NTOKEN = 8      # number of learned pooling tokens
NHID = 32       # hidden size (dim)
DIM_HEAD = 32
HEADS = 8
INNER = DIM_HEAD * HEADS  # 256

# ---- example input sizes
B = 2           # batch
S = 16          # source sequence length (keys/values = `tokens`)


def _attentive_pooling_kernel(rt_ref, x_ref, mask_ref,
                              wq_ref, wk_ref, wv_ref, wo_ref,
                              wl_ref, bl_ref,
                              out_ref,
                              heads_ref):
    """One batch element per grid step.

    rt_ref    : (NTOKEN, NHID)   learned return tokens (queries)
    x_ref     : (1, S, NHID)     context tokens (keys/values source)
    mask_ref  : (1, 1, S)        key padding mask, 1.0 = masked
    wq_ref    : (NHID, INNER)    to_q weight (transposed: x @ W)
    wk_ref    : (NHID, INNER)    to_kv weight, k half (transposed)
    wv_ref    : (NHID, INNER)    to_kv weight, v half (transposed)
    wo_ref    : (INNER, NHID)    to_out weight (transposed)
    wl_ref    : (1, NHID)        final linear weight (row layout)
    bl_ref    : (1,)             final linear bias (SMEM scalar)
    out_ref   : (1, 1, NTOKEN)   output (lane-dense)
    heads_ref : (NTOKEN, INNER)  VMEM scratch for concatenated head outputs
    """
    rt = rt_ref[...]                       # (NTOKEN, NHID)
    x = x_ref[0]                           # (S, NHID)
    mask = mask_ref[0]                     # (1, S)

    scale = DIM_HEAD ** -0.5
    neg_max = -jnp.finfo(jnp.float32).max  # matches -torch.finfo(dtype).max

    # Hoisted, lane-dense projections (three N=256 matmuls instead of 24 tiny ones).
    q = jnp.dot(rt, wq_ref[...], preferred_element_type=jnp.float32) * scale  # (NTOKEN, INNER)
    k = jnp.dot(x, wk_ref[...], preferred_element_type=jnp.float32)           # (S, INNER)
    v = jnp.dot(x, wv_ref[...], preferred_element_type=jnp.float32)           # (S, INNER)

    # Key-padding mask as an additive bias, computed once (not per head).
    # NOTE: identical to the where()-based masking for any row with at least
    # one unmasked key (all rows here); fully-masked rows are never passed.
    bias = jnp.where(mask > 0.5, neg_max, 0.0)                                # (1, S)

    for h in range(HEADS):                 # static loop over heads
        lo = h * DIM_HEAD
        hi = lo + DIM_HEAD
        q_h = q[:, lo:hi]                  # (NTOKEN, DIM_HEAD)
        k_h = k[:, lo:hi]                  # (S, DIM_HEAD)
        v_h = v[:, lo:hi]                  # (S, DIM_HEAD)

        # Contract over dim_head of both operands without materializing k_h.T.
        sim = lax.dot_general(q_h, k_h,
                              dimension_numbers=(((1,), (1,)), ((), ())),
                              preferred_element_type=jnp.float32)             # (NTOKEN, S)
        sim = sim + bias
        sim = sim - jnp.max(sim, axis=-1, keepdims=True)                      # stable softmax
        p = jnp.exp(sim)
        attn = p * pl.reciprocal(jnp.sum(p, axis=-1, keepdims=True), approx=True)

        heads_ref[:, lo:hi] = jnp.dot(attn, v_h,
                                      preferred_element_type=jnp.float32)     # (NTOKEN, DIM_HEAD)

    # Single K=256 output projection + residual with the return tokens.
    pooled = jnp.dot(heads_ref[...], wo_ref[...],
                     preferred_element_type=jnp.float32) + rt                 # (NTOKEN, NHID)

    # Final nhid -> 1 linear, emitted as a lane-dense (1, NTOKEN) row.
    y = lax.dot_general(wl_ref[...], pooled,
                        dimension_numbers=(((1,), (1,)), ((), ())),
                        preferred_element_type=jnp.float32) + bl_ref[0]       # (1, NTOKEN)
    out_ref[0] = y


def attentive_pooling(tokens, attention_mask, params):
    """tokens: (B, S, NHID) float32; attention_mask: (B, S) bool (True = pad)."""
    rt, wq, wk, wv, wo, wl, bl = params
    b, s, _ = tokens.shape                       # use runtime shapes, not module constants
    maskf = attention_mask.astype(jnp.float32).reshape(b, 1, s)
    wl_row = wl.reshape(1, NHID)                 # (NHID,1) -> (1,NHID), same data
    bl_s = bl.reshape(1)                         # scalar bias for SMEM

    grid_spec = pltpu.PrefetchScalarGridSpec(
        num_scalar_prefetch=0,
        grid=(b,),
        in_specs=[
            pl.BlockSpec((NTOKEN, NHID), lambda i: (0, 0)),     # return_tokens
            pl.BlockSpec((1, s, NHID), lambda i: (i, 0, 0)),    # tokens
            pl.BlockSpec((1, 1, s), lambda i: (i, 0, 0)),       # mask
            pl.BlockSpec((NHID, INNER), lambda i: (0, 0)),      # Wq
            pl.BlockSpec((NHID, INNER), lambda i: (0, 0)),      # Wk
            pl.BlockSpec((NHID, INNER), lambda i: (0, 0)),      # Wv
            pl.BlockSpec((INNER, NHID), lambda i: (0, 0)),      # Wout
            pl.BlockSpec((1, NHID), lambda i: (0, 0)),          # W linear (row layout)
            pl.BlockSpec(memory_space=pltpu.MemorySpace.SMEM),  # b linear (scalar)
        ],
        out_specs=pl.BlockSpec((1, 1, NTOKEN), lambda i: (i, 0, 0)),
        scratch_shapes=[pltpu.VMEM((NTOKEN, INNER), jnp.float32)],
    )

    out = pl.pallas_call(
        _attentive_pooling_kernel,
        out_shape=jax.ShapeDtypeStruct((b, 1, NTOKEN), jnp.float32),
        grid_spec=grid_spec,
        compiler_params=pltpu.CompilerParams(
            dimension_semantics=("parallel",)),
    )(rt, tokens, maskf, wq, wk, wv, wo, wl_row, bl_s)

    # (B, 1, NTOKEN) -> (B, NTOKEN, 1): pure metadata reshape (middle dim is 1).
    return out.reshape(b, NTOKEN, 1)


def reference(tokens, attention_mask, params):
    """Pure-JAX reference mirroring the PyTorch forward."""
    rt, wq, wk, wv, wo, wl, bl = params
    b = tokens.shape[0]
    scale = DIM_HEAD ** -0.5
    x_q = jnp.broadcast_to(rt[None], (b, NTOKEN, NHID))
    q = x_q @ wq
    k = tokens @ wk
    v = tokens @ wv

    def split(t):  # b n (h d) -> b h n d
        return t.reshape(b, -1, HEADS, DIM_HEAD).transpose(0, 2, 1, 3)

    q, k, v = split(q) * scale, split(k), split(v)
    sim = jnp.einsum('bhid,bhjd->bhij', q, k)
    kpm = jnp.broadcast_to(attention_mask[:, None, None, :], sim.shape)
    sim = jnp.where(kpm, -jnp.finfo(sim.dtype).max, sim)
    attn = jax.nn.softmax(sim, axis=-1)
    out = jnp.einsum('bhij,bhjd->bhid', attn, v)
    out = out.transpose(0, 2, 1, 3).reshape(b, NTOKEN, INNER)
    pooled = out @ wo + rt[None]
    return pooled @ wl + bl[0, 0]


def make_params(key):
    ks = jax.random.split(key, 6)
    rt = jax.random.normal(ks[0], (NTOKEN, NHID), jnp.float32)          # return_tokens ~ randn
    wq = 0.05 * jax.random.normal(ks[1], (NHID, INNER), jnp.float32)    # to_q (stored transposed)
    wk = 0.05 * jax.random.normal(ks[2], (NHID, INNER), jnp.float32)    # to_kv[:INNER]
    wv = 0.05 * jax.random.normal(ks[3], (NHID, INNER), jnp.float32)    # to_kv[INNER:]
    wo = 0.05 * jax.random.normal(ks[4], (INNER, NHID), jnp.float32)    # to_out
    wl = 0.05 * jax.random.normal(ks[5], (NHID, 1), jnp.float32)        # linear weight
    bl = jnp.full((1, 1), 0.01, jnp.float32)                            # linear bias
    return (rt, wq, wk, wv, wo, wl, bl)


if __name__ == "__main__":
    key = jax.random.PRNGKey(0)
    k_tok, k_par = jax.random.split(key)
    tokens = jax.random.normal(k_tok, (B, S, NHID), jnp.float32)
    # key padding mask: True = padded-out position (last 4 keys of batch 1)
    attention_mask = jnp.zeros((B, S), jnp.bool_).at[1, S - 4:].set(True)

    params = make_params(k_par)

    out = attentive_pooling(tokens, attention_mask, params)
    out = jax.block_until_ready(out)

    ref = reference(tokens, attention_mask, params)
    assert out.shape == (B, NTOKEN, 1)
    assert jnp.allclose(out, ref, atol=1e-3, rtol=1e-3), (
        f"max abs err {jnp.max(jnp.abs(out - ref))}")

    print("KERNEL_OK")
</pallas_src>

<mosaic_0001>
module attributes {stable_mosaic.version = 11 : i64} {
  func.func @_attentive_pooling_kernel(%arg0: i32, %arg1: memref<8x32xf32, #tpu.memory_space<vmem>>, %arg2: memref<1x16x32xf32, #tpu.memory_space<vmem>>, %arg3: memref<1x1x16xf32, #tpu.memory_space<vmem>>, %arg4: memref<32x256xf32, #tpu.memory_space<vmem>>, %arg5: memref<32x256xf32, #tpu.memory_space<vmem>>, %arg6: memref<32x256xf32, #tpu.memory_space<vmem>>, %arg7: memref<256x32xf32, #tpu.memory_space<vmem>>, %arg8: memref<1x32xf32, #tpu.memory_space<vmem>>, %arg9: memref<1xf32, #tpu.memory_space<smem>>, %arg10: memref<1x1x8xf32, #tpu.memory_space<vmem>>, %arg11: memref<8x256xf32, #tpu.memory_space<vmem>>) attributes {dimension_semantics = [#tpu.dimension_semantics<parallel>], iteration_bounds = array<i64: 2>, scalar_prefetch = 0 : i64, scratch_operands = 1 : i64, tpu.core_type = #tpu.core_type<tc>, window_params = [{pipeline_mode = #tpu.pipeline_mode<synchronous>, transform_indices = @transform_0, window_bounds = array<i64: 8, 32>}, {transform_indices = @transform_1, window_bounds = array<i64: 1, 16, 32>}, {transform_indices = @transform_2, window_bounds = array<i64: 1, 1, 16>}, {pipeline_mode = #tpu.pipeline_mode<synchronous>, transform_indices = @transform_3, window_bounds = array<i64: 32, 256>}, {pipeline_mode = #tpu.pipeline_mode<synchronous>, transform_indices = @transform_4, window_bounds = array<i64: 32, 256>}, {pipeline_mode = #tpu.pipeline_mode<synchronous>, transform_indices = @transform_5, window_bounds = array<i64: 32, 256>}, {pipeline_mode = #tpu.pipeline_mode<synchronous>, transform_indices = @transform_6, window_bounds = array<i64: 256, 32>}, {pipeline_mode = #tpu.pipeline_mode<synchronous>, transform_indices = @transform_7, window_bounds = array<i64: 1, 32>}, {transform_indices = @transform_8, window_bounds = array<i64: 1>}, {transform_indices = @transform_9, window_bounds = array<i64: 1, 1, 8>}]} {
    %c0 = arith.constant 0 : index
    %c0_0 = arith.constant 0 : index
    %0 = vector.load %arg1[%c0, %c0_0] : memref<8x32xf32, #tpu.memory_space<vmem>>, vector<8x32xf32>
    %c0_1 = arith.constant 0 : index
    %c0_2 = arith.constant 0 : index
    %c0_3 = arith.constant 0 : index
    %1 = vector.load %arg2[%c0_1, %c0_2, %c0_3] : memref<1x16x32xf32, #tpu.memory_space<vmem>>, vector<1x16x32xf32>
    %2 = vector.shape_cast %1 : vector<1x16x32xf32> to vector<16x32xf32>
    %c0_4 = arith.constant 0 : index
    %c0_5 = arith.constant 0 : index
    %c0_6 = arith.constant 0 : index
    %3 = vector.load %arg3[%c0_4, %c0_5, %c0_6] : memref<1x1x16xf32, #tpu.memory_space<vmem>>, vector<1x1x16xf32>
    %4 = vector.shape_cast %3 : vector<1x1x16xf32> to vector<1x16xf32>
    %c0_7 = arith.constant 0 : index
    %c0_8 = arith.constant 0 : index
    %5 = vector.load %arg4[%c0_7, %c0_8] : memref<32x256xf32, #tpu.memory_space<vmem>>, vector<32x256xf32>
    %cst = arith.constant dense<0.000000e+00> : vector<8x256xf32>
    %6 = tpu.matmul %0, %5, %cst {dimension_numbers = #tpu.dot_dimension_numbers<[1], [0], [0], [1], [0, 0, 1, 1], [], []>} : vector<8x32xf32>, vector<32x256xf32>, vector<8x256xf32> -> vector<8x256xf32>
    %cst_9 = arith.constant 0.176776692 : f32
    %7 = vector.broadcast %cst_9 : f32 to vector<8x256xf32>
    %8 = arith.mulf %6, %7 : vector<8x256xf32>
    %c0_10 = arith.constant 0 : index
    %c0_11 = arith.constant 0 : index
    %9 = vector.load %arg5[%c0_10, %c0_11] : memref<32x256xf32, #tpu.memory_space<vmem>>, vector<32x256xf32>
    %cst_12 = arith.constant dense<0.000000e+00> : vector<16x256xf32>
    %10 = tpu.matmul %2, %9, %cst_12 {dimension_numbers = #tpu.dot_dimension_numbers<[1], [0], [0], [1], [0, 0, 1, 1], [], []>} : vector<16x32xf32>, vector<32x256xf32>, vector<16x256xf32> -> vector<16x256xf32>
    %c0_13 = arith.constant 0 : index
    %c0_14 = arith.constant 0 : index
    %11 = vector.load %arg6[%c0_13, %c0_14] : memref<32x256xf32, #tpu.memory_space<vmem>>, vector<32x256xf32>
    %cst_15 = arith.constant dense<0.000000e+00> : vector<16x256xf32>
    %12 = tpu.matmul %2, %11, %cst_15 {dimension_numbers = #tpu.dot_dimension_numbers<[1], [0], [0], [1], [0, 0, 1, 1], [], []>} : vector<16x32xf32>, vector<32x256xf32>, vector<16x256xf32> -> vector<16x256xf32>
    %cst_16 = arith.constant 5.000000e-01 : f32
    %13 = vector.broadcast %cst_16 : f32 to vector<1x16xf32>
    %14 = arith.cmpf ogt, %4, %13 : vector<1x16xf32>
    %cst_17 = arith.constant -3.40282347E+38 : f32
    %cst_18 = arith.constant 0.000000e+00 : f32
    %15 = vector.broadcast %cst_17 : f32 to vector<1x16xf32>
    %16 = vector.broadcast %cst_18 : f32 to vector<1x16xf32>
    %17 = arith.select %14, %15, %16 : vector<1x16xi1>, vector<1x16xf32>
    %18 = vector.extract_strided_slice %8 {offsets = [0, 0], sizes = [8, 32], strides = [1, 1]} : vector<8x256xf32> to vector<8x32xf32>
    %19 = vector.extract_strided_slice %10 {offsets = [0, 0], sizes = [16, 32], strides = [1, 1]} : vector<16x256xf32> to vector<16x32xf32>
    %20 = vector.extract_strided_slice %12 {offsets = [0, 0], sizes = [16, 32], strides = [1, 1]} : vector<16x256xf32> to vector<16x32xf32>
    %cst_19 = arith.constant dense<0.000000e+00> : vector<8x16xf32>
    %21 = tpu.matmul %18, %19, %cst_19 {dimension_numbers = #tpu.dot_dimension_numbers<[1], [1], [0], [0], [0, 0, 1, 0], [], []>} : vector<8x32xf32>, vector<16x32xf32>, vector<8x16xf32> -> vector<8x16xf32>
    %22 = vector.broadcast %17 : vector<1x16xf32> to vector<8x16xf32>
    %23 = arith.addf %21, %22 : vector<8x16xf32>
    %cst_20 = arith.constant dense<0xFF800000> : vector<8xf32>
    %24 = vector.multi_reduction <maximumf>, %23, %cst_20 [1] : vector<8x16xf32> to vector<8xf32>
    %25 = vector.shape_cast %24 : vector<8xf32> to vector<8x1xf32>
    %26 = vector.broadcast %25 : vector<8x1xf32> to vector<8x16xf32>
    %27 = arith.subf %23, %26 : vector<8x16xf32>
    %28 = math.exp %27 : vector<8x16xf32>
    %cst_21 = arith.constant dense<0.000000e+00> : vector<8xf32>
    %29 = vector.multi_reduction <add>, %28, %cst_21 [1] : vector<8x16xf32> to vector<8xf32>
    %30 = vector.shape_cast %29 : vector<8xf32> to vector<8x1xf32>
    %31 = tpu.reciprocal %30 {approx = true} : vector<8x1xf32> -> vector<8x1xf32>
    %32 = vector.broadcast %31 : vector<8x1xf32> to vector<8x16xf32>
    %33 = arith.mulf %28, %32 : vector<8x16xf32>
    %cst_22 = arith.constant dense<0.000000e+00> : vector<8x32xf32>
    %34 = tpu.matmul %33, %20, %cst_22 {dimension_numbers = #tpu.dot_dimension_numbers<[1], [0], [0], [1], [0, 0, 1, 1], [], []>} : vector<8x16xf32>, vector<16x32xf32>, vector<8x32xf32> -> vector<8x32xf32>
    %c0_23 = arith.constant 0 : index
    %c0_24 = arith.constant 0 : index
    %35 = vector.load %arg11[%c0_23, %c0_24] : memref<8x256xf32, #tpu.memory_space<vmem>>, vector<8x32xf32>
    tpu.vector_store %arg11[%c0_23, %c0_24], %34 {strides = array<i32>} : memref<8x256xf32, #tpu.memory_space<vmem>>, vector<8x32xf32>,
    %36 = vector.extract_strided_slice %8 {offsets = [0, 32], sizes = [8, 32], strides = [1, 1]} : vector<8x256xf32> to vector<8x32xf32>
    %37 = vector.extract_strided_slice %10 {offsets = [0, 32], sizes = [16, 32], strides = [1, 1]} : vector<16x256xf32> to vector<16x32xf32>
    %38 = vector.extract_strided_slice %12 {offsets = [0, 32], sizes = [16, 32], strides = [1, 1]} : vector<16x256xf32> to vector<16x32xf32>
    %cst_25 = arith.constant dense<0.000000e+00> : vector<8x16xf32>
    %39 = tpu.matmul %36, %37, %cst_25 {dimension_numbers = #tpu.dot_dimension_numbers<[1], [1], [0], [0], [0, 0, 1, 0], [], []>} : vector<8x32xf32>, vector<16x32xf32>, vector<8x16xf32> -> vector<8x16xf32>
    %40 = vector.broadcast %17 : vector<1x16xf32> to vector<8x16xf32>
    %41 = arith.addf %39, %40 : vector<8x16xf32>
    %cst_26 = arith.constant dense<0xFF800000> : vector<8xf32>
    %42 = vector.multi_reduction <maximumf>, %41, %cst_26 [1] : vector<8x16xf32> to vector<8xf32>
    %43 = vector.shape_cast %42 : vector<8xf32> to vector<8x1xf32>
    %44 = vector.broadcast %43 : vector<8x1xf32> to vector<8x16xf32>
    %45 = arith.subf %41, %44 : vector<8x16xf32>
    %46 = math.exp %45 : vector<8x16xf32>
    %cst_27 = arith.constant dense<0.000000e+00> : vector<8xf32>
    %47 = vector.multi_reduction <add>, %46, %cst_27 [1] : vector<8x16xf32> to vector<8xf32>
    %48 = vector.shape_cast %47 : vector<8xf32> to vector<8x1xf32>
    %49 = tpu.reciprocal %48 {approx = true} : vector<8x1xf32> -> vector<8x1xf32>
    %50 = vector.broadcast %49 : vector<8x1xf32> to vector<8x16xf32>
    %51 = arith.mulf %46, %50 : vector<8x16xf32>
    %cst_28 = arith.constant dense<0.000000e+00> : vector<8x32xf32>
    %52 = tpu.matmul %51, %38, %cst_28 {dimension_numbers = #tpu.dot_dimension_numbers<[1], [0], [0], [1], [0, 0, 1, 1], [], []>} : vector<8x16xf32>, vector<16x32xf32>, vector<8x32xf32> -> vector<8x32xf32>
    %c0_29 = arith.constant 0 : index
    %c32 = arith.constant 32 : index
    %53 = vector.load %arg11[%c0_29, %c32] : memref<8x256xf32, #tpu.memory_space<vmem>>, vector<8x32xf32>
    tpu.vector_store %arg11[%c0_29, %c32], %52 {strides = array<i32>} : memref<8x256xf32, #tpu.memory_space<vmem>>, vector<8x32xf32>,
    %54 = vector.extract_strided_slice %8 {offsets = [0, 64], sizes = [8, 32], strides = [1, 1]} : vector<8x256xf32> to vector<8x32xf32>
    %55 = vector.extract_strided_slice %10 {offsets = [0, 64], sizes = [16, 32], strides = [1, 1]} : vector<16x256xf32> to vector<16x32xf32>
    %56 = vector.extract_strided_slice %12 {offsets = [0, 64], sizes = [16, 32], strides = [1, 1]} : vector<16x256xf32> to vector<16x32xf32>
    %cst_30 = arith.constant dense<0.000000e+00> : vector<8x16xf32>
    %57 = tpu.matmul %54, %55, %cst_30 {dimension_numbers = #tpu.dot_dimension_numbers<[1], [1], [0], [0], [0, 0, 1, 0], [], []>} : vector<8x32xf32>, vector<16x32xf32>, vector<8x16xf32> -> vector<8x16xf32>
    %58 = vector.broadcast %17 : vector<1x16xf32> to vector<8x16xf32>
    %59 = arith.addf %57, %58 : vector<8x16xf32>
    %cst_31 = arith.constant dense<0xFF800000> : vector<8xf32>
    %60 = vector.multi_reduction <maximumf>, %59, %cst_31 [1] : vector<8x16xf32> to vector<8xf32>
    %61 = vector.shape_cast %60 : vector<8xf32> to vector<8x1xf32>
    %62 = vector.broadcast %61 : vector<8x1xf32> to vector<8x16xf32>
    %63 = arith.subf %59, %62 : vector<8x16xf32>
    %64 = math.exp %63 : vector<8x16xf32>
    %cst_32 = arith.constant dense<0.000000e+00> : vector<8xf32>
    %65 = vector.multi_reduction <add>, %64, %cst_32 [1] : vector<8x16xf32> to vector<8xf32>
    %66 = vector.shape_cast %65 : vector<8xf32> to vector<8x1xf32>
    %67 = tpu.reciprocal %66 {approx = true} : vector<8x1xf32> -> vector<8x1xf32>
    %68 = vector.broadcast %67 : vector<8x1xf32> to vector<8x16xf32>
    %69 = arith.mulf %64, %68 : vector<8x16xf32>
    %cst_33 = arith.constant dense<0.000000e+00> : vector<8x32xf32>
    %70 = tpu.matmul %69, %56, %cst_33 {dimension_numbers = #tpu.dot_dimension_numbers<[1], [0], [0], [1], [0, 0, 1, 1], [], []>} : vector<8x16xf32>, vector<16x32xf32>, vector<8x32xf32> -> vector<8x32xf32>
    %c0_34 = arith.constant 0 : index
    %c64 = arith.constant 64 : index
    %71 = vector.load %arg11[%c0_34, %c64] : memref<8x256xf32, #tpu.memory_space<vmem>>, vector<8x32xf32>
    tpu.vector_store %arg11[%c0_34, %c64], %70 {strides = array<i32>} : memref<8x256xf32, #tpu.memory_space<vmem>>, vector<8x32xf32>,
    %72 = vector.extract_strided_slice %8 {offsets = [0, 96], sizes = [8, 32], strides = [1, 1]} : vector<8x256xf32> to vector<8x32xf32>
    %73 = vector.extract_strided_slice %10 {offsets = [0, 96], sizes = [16, 32], strides = [1, 1]} : vector<16x256xf32> to vector<16x32xf32>
    %74 = vector.extract_strided_slice %12 {offsets = [0, 96], sizes = [16, 32], strides = [1, 1]} : vector<16x256xf32> to vector<16x32xf32>
    %cst_35 = arith.constant dense<0.000000e+00> : vector<8x16xf32>
    %75 = tpu.matmul %72, %73, %cst_35 {dimension_numbers = #tpu.dot_dimension_numbers<[1], [1], [0], [0], [0, 0, 1, 0], [], []>} : vector<8x32xf32>, vector<16x32xf32>, vector<8x16xf32> -> vector<8x16xf32>
    %76 = vector.broadcast %17 : vector<1x16xf32> to vector<8x16xf32>
    %77 = arith.addf %75, %76 : vector<8x16xf32>
    %cst_36 = arith.constant dense<0xFF800000> : vector<8xf32>
    %78 = vector.multi_reduction <maximumf>, %77, %cst_36 [1] : vector<8x16xf32> to vector<8xf32>
    %79 = vector.shape_cast %78 : vector<8xf32> to vector<8x1xf32>
    %80 = vector.broadcast %79 : vector<8x1xf32> to vector<8x16xf32>
    %81 = arith.subf %77, %80 : vector<8x16xf32>
    %82 = math.exp %81 : vector<8x16xf32>
    %cst_37 = arith.constant dense<0.000000e+00> : vector<8xf32>
    %83 = vector.multi_reduction <add>, %82, %cst_37 [1] : vector<8x16xf32> to vector<8xf32>
    %84 = vector.shape_cast %83 : vector<8xf32> to vector<8x1xf32>
    %85 = tpu.reciprocal %84 {approx = true} : vector<8x1xf32> -> vector<8x1xf32>
    %86 = vector.broadcast %85 : vector<8x1xf32> to vector<8x16xf32>
    %87 = arith.mulf %82, %86 : vector<8x16xf32>
    %cst_38 = arith.constant dense<0.000000e+00> : vector<8x32xf32>
    %88 = tpu.matmul %87, %74, %cst_38 {dimension_numbers = #tpu.dot_dimension_numbers<[1], [0], [0], [1], [0, 0, 1, 1], [], []>} : vector<8x16xf32>, vector<16x32xf32>, vector<8x32xf32> -> vector<8x32xf32>
    %c0_39 = arith.constant 0 : index
    %c96 = arith.constant 96 : index
    %89 = vector.load %arg11[%c0_39, %c96] : memref<8x256xf32, #tpu.memory_space<vmem>>, vector<8x32xf32>
    tpu.vector_store %arg11[%c0_39, %c96], %88 {strides = array<i32>} : memref<8x256xf32, #tpu.memory_space<vmem>>, vector<8x32xf32>,
    %90 = vector.extract_strided_slice %8 {offsets = [0, 128], sizes = [8, 32], strides = [1, 1]} : vector<8x256xf32> to vector<8x32xf32>
    %91 = vector.extract_strided_slice %10 {offsets = [0, 128], sizes = [16, 32], strides = [1, 1]} : vector<16x256xf32> to vector<16x32xf32>
    %92 = vector.extract_strided_slice %12 {offsets = [0, 128], sizes = [16, 32], strides = [1, 1]} : vector<16x256xf32> to vector<16x32xf32>
    %cst_40 = arith.constant dense<0.000000e+00> : vector<8x16xf32>
    %93 = tpu.matmul %90, %91, %cst_40 {dimension_numbers = #tpu.dot_dimension_numbers<[1], [1], [0], [0], [0, 0, 1, 0], [], []>} : vector<8x32xf32>, vector<16x32xf32>, vector<8x16xf32> -> vector<8x16xf32>
    %94 = vector.broadcast %17 : vector<1x16xf32> to vector<8x16xf32>
    %95 = arith.addf %93, %94 : vector<8x16xf32>
    %cst_41 = arith.constant dense<0xFF800000> : vector<8xf32>
    %96 = vector.multi_reduction <maximumf>, %95, %cst_41 [1] : vector<8x16xf32> to vector<8xf32>
    %97 = vector.shape_cast %96 : vector<8xf32> to vector<8x1xf32>
    %98 = vector.broadcast %97 : vector<8x1xf32> to vector<8x16xf32>
    %99 = arith.subf %95, %98 : vector<8x16xf32>
    %100 = math.exp %99 : vector<8x16xf32>
    %cst_42 = arith.constant dense<0.000000e+00> : vector<8xf32>
    %101 = vector.multi_reduction <add>, %100, %cst_42 [1] : vector<8x16xf32> to vector<8xf32>
    %102 = vector.shape_cast %101 : vector<8xf32> to vector<8x1xf32>
    %103 = tpu.reciprocal %102 {approx = true} : vector<8x1xf32> -> vector<8x1xf32>
    %104 = vector.broadcast %103 : vector<8x1xf32> to vector<8x16xf32>
    %105 = arith.mulf %100, %104 : vector<8x16xf32>
    %cst_43 = arith.constant dense<0.000000e+00> : vector<8x32xf32>
    %106 = tpu.matmul %105, %92, %cst_43 {dimension_numbers = #tpu.dot_dimension_numbers<[1], [0], [0], [1], [0, 0, 1, 1], [], []>} : vector<8x16xf32>, vector<16x32xf32>, vector<8x32xf32> -> vector<8x32xf32>
    %c0_44 = arith.constant 0 : index
    %c128 = arith.constant 128 : index
    %107 = vector.load %arg11[%c0_44, %c128] : memref<8x256xf32, #tpu.memory_space<vmem>>, vector<8x32xf32>
    tpu.vector_store %arg11[%c0_44, %c128], %106 {strides = array<i32>} : memref<8x256xf32, #tpu.memory_space<vmem>>, vector<8x32xf32>,
    %108 = vector.extract_strided_slice %8 {offsets = [0, 160], sizes = [8, 32], strides = [1, 1]} : vector<8x256xf32> to vector<8x32xf32>
    %109 = vector.extract_strided_slice %10 {offsets = [0, 160], sizes = [16, 32], strides = [1, 1]} : vector<16x256xf32> to vector<16x32xf32>
    %110 = vector.extract_strided_slice %12 {offsets = [0, 160], sizes = [16, 32], strides = [1, 1]} : vector<16x256xf32> to vector<16x32xf32>
    %cst_45 = arith.constant dense<0.000000e+00> : vector<8x16xf32>
    %111 = tpu.matmul %108, %109, %cst_45 {dimension_numbers = #tpu.dot_dimension_numbers<[1], [1], [0], [0], [0, 0, 1, 0], [], []>} : vector<8x32xf32>, vector<16x32xf32>, vector<8x16xf32> -> vector<8x16xf32>
    %112 = vector.broadcast %17 : vector<1x16xf32> to vector<8x16xf32>
    %113 = arith.addf %111, %112 : vector<8x16xf32>
    %cst_46 = arith.constant dense<0xFF800000> : vector<8xf32>
    %114 = vector.multi_reduction <maximumf>, %113, %cst_46 [1] : vector<8x16xf32> to vector<8xf32>
    %115 = vector.shape_cast %114 : vector<8xf32> to vector<8x1xf32>
    %116 = vector.broadcast %115 : vector<8x1xf32> to vector<8x16xf32>
    %117 = arith.subf %113, %116 : vector<8x16xf32>
    %118 = math.exp %117 : vector<8x16xf32>
    %cst_47 = arith.constant dense<0.000000e+00> : vector<8xf32>
    %119 = vector.multi_reduction <add>, %118, %cst_47 [1] : vector<8x16xf32> to vector<8xf32>
    %120 = vector.shape_cast %119 : vector<8xf32> to vector<8x1xf32>
    %121 = tpu.reciprocal %120 {approx = true} : vector<8x1xf32> -> vector<8x1xf32>
    %122 = vector.broadcast %121 : vector<8x1xf32> to vector<8x16xf32>
    %123 = arith.mulf %118, %122 : vector<8x16xf32>
    %cst_48 = arith.constant dense<0.000000e+00> : vector<8x32xf32>
    %124 = tpu.matmul %123, %110, %cst_48 {dimension_numbers = #tpu.dot_dimension_numbers<[1], [0], [0], [1], [0, 0, 1, 1], [], []>} : vector<8x16xf32>, vector<16x32xf32>, vector<8x32xf32> -> vector<8x32xf32>
    %c0_49 = arith.constant 0 : index
    %c160 = arith.constant 160 : index
    %125 = vector.load %arg11[%c0_49, %c160] : memref<8x256xf32, #tpu.memory_space<vmem>>, vector<8x32xf32>
    tpu.vector_store %arg11[%c0_49, %c160], %124 {strides = array<i32>} : memref<8x256xf32, #tpu.memory_space<vmem>>, vector<8x32xf32>,
    %126 = vector.extract_strided_slice %8 {offsets = [0, 192], sizes = [8, 32], strides = [1, 1]} : vector<8x256xf32> to vector<8x32xf32>
    %127 = vector.extract_strided_slice %10 {offsets = [0, 192], sizes = [16, 32], strides = [1, 1]} : vector<16x256xf32> to vector<16x32xf32>
    %128 = vector.extract_strided_slice %12 {offsets = [0, 192], sizes = [16, 32], strides = [1, 1]} : vector<16x256xf32> to vector<16x32xf32>
    %cst_50 = arith.constant dense<0.000000e+00> : vector<8x16xf32>
    %129 = tpu.matmul %126, %127, %cst_50 {dimension_numbers = #tpu.dot_dimension_numbers<[1], [1], [0], [0], [0, 0, 1, 0], [], []>} : vector<8x32xf32>, vector<16x32xf32>, vector<8x16xf32> -> vector<8x16xf32>
    %130 = vector.broadcast %17 : vector<1x16xf32> to vector<8x16xf32>
    %131 = arith.addf %129, %130 : vector<8x16xf32>
    %cst_51 = arith.constant dense<0xFF800000> : vector<8xf32>
    %132 = vector.multi_reduction <maximumf>, %131, %cst_51 [1] : vector<8x16xf32> to vector<8xf32>
    %133 = vector.shape_cast %132 : vector<8xf32> to vector<8x1xf32>
    %134 = vector.broadcast %133 : vector<8x1xf32> to vector<8x16xf32>
    %135 = arith.subf %131, %134 : vector<8x16xf32>
    %136 = math.exp %135 : vector<8x16xf32>
    %cst_52 = arith.constant dense<0.000000e+00> : vector<8xf32>
    %137 = vector.multi_reduction <add>, %136, %cst_52 [1] : vector<8x16xf32> to vector<8xf32>
    %138 = vector.shape_cast %137 : vector<8xf32> to vector<8x1xf32>
    %139 = tpu.reciprocal %138 {approx = true} : vector<8x1xf32> -> vector<8x1xf32>
    %140 = vector.broadcast %139 : vector<8x1xf32> to vector<8x16xf32>
    %141 = arith.mulf %136, %140 : vector<8x16xf32>
    %cst_53 = arith.constant dense<0.000000e+00> : vector<8x32xf32>
    %142 = tpu.matmul %141, %128, %cst_53 {dimension_numbers = #tpu.dot_dimension_numbers<[1], [0], [0], [1], [0, 0, 1, 1], [], []>} : vector<8x16xf32>, vector<16x32xf32>, vector<8x32xf32> -> vector<8x32xf32>
    %c0_54 = arith.constant 0 : index
    %c192 = arith.constant 192 : index
    %143 = vector.load %arg11[%c0_54, %c192] : memref<8x256xf32, #tpu.memory_space<vmem>>, vector<8x32xf32>
    tpu.vector_store %arg11[%c0_54, %c192], %142 {strides = array<i32>} : memref<8x256xf32, #tpu.memory_space<vmem>>, vector<8x32xf32>,
    %144 = vector.extract_strided_slice %8 {offsets = [0, 224], sizes = [8, 32], strides = [1, 1]} : vector<8x256xf32> to vector<8x32xf32>
    %145 = vector.extract_strided_slice %10 {offsets = [0, 224], sizes = [16, 32], strides = [1, 1]} : vector<16x256xf32> to vector<16x32xf32>
    %146 = vector.extract_strided_slice %12 {offsets = [0, 224], sizes = [16, 32], strides = [1, 1]} : vector<16x256xf32> to vector<16x32xf32>
    %cst_55 = arith.constant dense<0.000000e+00> : vector<8x16xf32>
    %147 = tpu.matmul %144, %145, %cst_55 {dimension_numbers = #tpu.dot_dimension_numbers<[1], [1], [0], [0], [0, 0, 1, 0], [], []>} : vector<8x32xf32>, vector<16x32xf32>, vector<8x16xf32> -> vector<8x16xf32>
    %148 = vector.broadcast %17 : vector<1x16xf32> to vector<8x16xf32>
    %149 = arith.addf %147, %148 : vector<8x16xf32>
    %cst_56 = arith.constant dense<0xFF800000> : vector<8xf32>
    %150 = vector.multi_reduction <maximumf>, %149, %cst_56 [1] : vector<8x16xf32> to vector<8xf32>
    %151 = vector.shape_cast %150 : vector<8xf32> to vector<8x1xf32>
    %152 = vector.broadcast %151 : vector<8x1xf32> to vector<8x16xf32>
    %153 = arith.subf %149, %152 : vector<8x16xf32>
    %154 = math.exp %153 : vector<8x16xf32>
    %cst_57 = arith.constant dense<0.000000e+00> : vector<8xf32>
    %155 = vector.multi_reduction <add>, %154, %cst_57 [1] : vector<8x16xf32> to vector<8xf32>
    %156 = vector.shape_cast %155 : vector<8xf32> to vector<8x1xf32>
    %157 = tpu.reciprocal %156 {approx = true} : vector<8x1xf32> -> vector<8x1xf32>
    %158 = vector.broadcast %157 : vector<8x1xf32> to vector<8x16xf32>
    %159 = arith.mulf %154, %158 : vector<8x16xf32>
    %cst_58 = arith.constant dense<0.000000e+00> : vector<8x32xf32>
    %160 = tpu.matmul %159, %146, %cst_58 {dimension_numbers = #tpu.dot_dimension_numbers<[1], [0], [0], [1], [0, 0, 1, 1], [], []>} : vector<8x16xf32>, vector<16x32xf32>, vector<8x32xf32> -> vector<8x32xf32>
    %c0_59 = arith.constant 0 : index
    %c224 = arith.constant 224 : index
    %161 = vector.load %arg11[%c0_59, %c224] : memref<8x256xf32, #tpu.memory_space<vmem>>, vector<8x32xf32>
    tpu.vector_store %arg11[%c0_59, %c224], %160 {strides = array<i32>} : memref<8x256xf32, #tpu.memory_space<vmem>>, vector<8x32xf32>,
    %c0_60 = arith.constant 0 : index
    %c0_61 = arith.constant 0 : index
    %162 = vector.load %arg11[%c0_60, %c0_61] : memref<8x256xf32, #tpu.memory_space<vmem>>, vector<8x256xf32>
    %c0_62 = arith.constant 0 : index
    %c0_63 = arith.constant 0 : index
    %163 = vector.load %arg7[%c0_62, %c0_63] : memref<256x32xf32, #tpu.memory_space<vmem>>, vector<256x32xf32>
    %cst_64 = arith.constant dense<0.000000e+00> : vector<8x32xf32>
    %164 = tpu.matmul %162, %163, %cst_64 {dimension_numbers = #tpu.dot_dimension_numbers<[1], [0], [0], [1], [0, 0, 1, 1], [], []>} : vector<8x256xf32>, vector<256x32xf32>, vector<8x32xf32> -> vector<8x32xf32>
    %165 = arith.addf %164, %0 : vector<8x32xf32>
    %c0_65 = arith.constant 0 : index
    %c0_66 = arith.constant 0 : index
    %166 = vector.load %arg8[%c0_65, %c0_66] : memref<1x32xf32, #tpu.memory_space<vmem>>, vector<1x32xf32>
    %cst_67 = arith.constant dense<0.000000e+00> : vector<1x8xf32>
    %167 = tpu.matmul %166, %165, %cst_67 {dimension_numbers = #tpu.dot_dimension_numbers<[1], [1], [0], [0], [0, 0, 1, 0], [], []>} : vector<1x32xf32>, vector<8x32xf32>, vector<1x8xf32> -> vector<1x8xf32>
    %c0_68 = arith.constant 0 : index
    %168 = memref.load %arg9[%c0_68] : memref<1xf32, #tpu.memory_space<smem>>
    %169 = vector.broadcast %168 : f32 to vector<1x8xf32>
    %170 = arith.addf %167, %169 : vector<1x8xf32>
    %c0_69 = arith.constant 0 : index
    %c0_70 = arith.constant 0 : index
    %c0_71 = arith.constant 0 : index
    %171 = vector.load %arg10[%c0_69, %c0_70, %c0_71] : memref<1x1x8xf32, #tpu.memory_space<vmem>>, vector<1x1x8xf32>
    %172 = vector.shape_cast %171 : vector<1x1x8xf32> to vector<1x8xf32>
    %173 = vector.shape_cast %170 : vector<1x8xf32> to vector<1x1x8xf32>
    tpu.vector_store %arg10[%c0_69, %c0_70, %c0_71], %173 {strides = array<i32>} : memref<1x1x8xf32, #tpu.memory_space<vmem>>, vector<1x1x8xf32>,
    return
  }
  func.func @transform_0(%arg0: i32) -> (i32, i32) {
    %c0_i32 = arith.constant 0 : i32
    %c0_i32_0 = arith.constant 0 : i32
    %c0_i32_1 = arith.constant 0 : i32
    return %c0_i32, %c0_i32_0 : i32, i32
  }
  func.func @transform_1(%arg0: i32) -> (i32, i32, i32) {
    %c0_i32 = arith.constant 0 : i32
    %c0_i32_0 = arith.constant 0 : i32
    %c0_i32_1 = arith.constant 0 : i32
    return %arg0, %c0_i32, %c0_i32_0 : i32, i32, i32
  }
  func.func @transform_2(%arg0: i32) -> (i32, i32, i32) {
    %c0_i32 = arith.constant 0 : i32
    %c0_i32_0 = arith.constant 0 : i32
    %c0_i32_1 = arith.constant 0 : i32
    return %arg0, %c0_i32, %c0_i32_0 : i32, i32, i32
  }
  func.func @transform_3(%arg0: i32) -> (i32, i32) {
    %c0_i32 = arith.constant 0 : i32
    %c0_i32_0 = arith.constant 0 : i32
    %c0_i32_1 = arith.constant 0 : i32
    return %c0_i32, %c0_i32_0 : i32, i32
  }
  func.func @transform_4(%arg0: i32) -> (i32, i32) {
    %c0_i32 = arith.constant 0 : i32
    %c0_i32_0 = arith.constant 0 : i32
    %c0_i32_1 = arith.constant 0 : i32
    return %c0_i32, %c0_i32_0 : i32, i32
  }
  func.func @transform_5(%arg0: i32) -> (i32, i32) {
    %c0_i32 = arith.constant 0 : i32
    %c0_i32_0 = arith.constant 0 : i32
    %c0_i32_1 = arith.constant 0 : i32
    return %c0_i32, %c0_i32_0 : i32, i32
  }
  func.func @transform_6(%arg0: i32) -> (i32, i32) {
    %c0_i32 = arith.constant 0 : i32
    %c0_i32_0 = arith.constant 0 : i32
    %c0_i32_1 = arith.constant 0 : i32
    return %c0_i32, %c0_i32_0 : i32, i32
  }
  func.func @transform_7(%arg0: i32) -> (i32, i32) {
    %c0_i32 = arith.constant 0 : i32
    %c0_i32_0 = arith.constant 0 : i32
    %c0_i32_1 = arith.constant 0 : i32
    return %c0_i32, %c0_i32_0 : i32, i32
  }
  func.func @transform_8(%arg0: i32) -> i32 {
    %c0_i32 = arith.constant 0 : i32
    %c0_i32_0 = arith.constant 0 : i32
    return %c0_i32 : i32
  }
  func.func @transform_9(%arg0: i32) -> (i32, i32, i32) {
    %c0_i32 = arith.constant 0 : i32
    %c0_i32_0 = arith.constant 0 : i32
    %c0_i32_1 = arith.constant 0 : i32
    return %arg0, %c0_i32, %c0_i32_0 : i32, i32, i32
  }
}

</mosaic_0001>

<llo_original>
// kernel: tpu_custom_call.1
$region0: #{tpu_custom_call.1}
  #allocation0 [shape = 'u32[]', space=smem, size = 0x4, offset = 0x4, fixed_abs, tag = 'smem constant byte address 0x4 - core index']
  #allocation1 [shape = 'u32[144,128]{1,0:T(1,128)}', space=vmem, size = 0x12000, scoped, tag = 'internal scratch']
  #allocation2 [shape = 'f32[8,256]{1,0:T(8,128)}', space=vmem, size = 0x2000, scoped, tag = 'scratch operand']
  #allocation3 [shape = 'f32[1]{0:T(128)S(6)}', space=smem, size = 0x200, scoped, tag = 'scoped memory for tpu_custom_call.1']
  %s0 = inlined_call_operand.vmem [shape: f32[8,32], index: 0, kind: input, shape index: {}]
  %s1 = inlined_call_operand.vmem [shape: f32[2,16,32], index: 1, kind: input, shape index: {}]
  %s2 = inlined_call_operand.vmem [shape: f32[2,1,16], index: 2, kind: input, shape index: {}]
  %s3 = inlined_call_operand.vmem [shape: f32[32,256], index: 3, kind: input, shape index: {}]
  %s4 = inlined_call_operand.vmem [shape: f32[32,256], index: 4, kind: input, shape index: {}]
  %s5 = inlined_call_operand.vmem [shape: f32[32,256], index: 5, kind: input, shape index: {}]
  %s6 = inlined_call_operand.vmem [shape: f32[256,32], index: 6, kind: input, shape index: {}]
  %s7 = inlined_call_operand.vmem [shape: f32[1,32], index: 7, kind: input, shape index: {}]
  %s8 = inlined_call_operand.<no memory space> [shape: f32[1], index: 8, kind: input, shape index: {}]
  %s9 = inlined_call_operand.hbm [shape: f32[2,1,8], index: 9, kind: output, shape index: {}]
  %s10 = sld [smem:[#allocation0]]
  $region69: #{tpu_custom_call.1} parent=0
    _
  %s12 = ssub.s32 1, %s10
  %s13 = scalar_select 0, %s12, %s10
  %14 = sst [smem:[#allocation3]] %s8
  $region1: #{tpu_custom_call.1} parent=0
    #allocation4 [shape = 'u8[1024]{0}', space=vmem, size = 0x400, scoped, tag = 'output window, operand 0']
    #allocation5 [shape = 's32[2]{0}', space=sflag, size = 0x8, scoped, tag = 'scoped memory for tpu_custom_call.1']
    %15 = vsyncpa [#allocation5], 0
    %s16 = scalar_lea.sflag [#allocation5], 1
    %17 = vsyncpa %s16, 0
    loop: start=0, step=1, limit=4
    $region2: #{tpu_custom_call.1} parent=1 // loop_pre_header
      _
    $region3: #{tpu_custom_call.1} parent=1 // loop_header
      %s19 = sphi 0, %s23
      %p20 = scmp.ge.s32.totalorder %s19, 4
      %s27 = sphi 0, %s27
      %s29 = sphi 0, %s27
      %s30 = sphi 0, %s29
      %s44 = sphi 0, %s30
      %s50 = sphi 0, %s52
      %s53 = sphi 0, %s50
      %s54 = sphi 0, %s53
      %s70 = sphi 0, %s54
      %s76 = sphi 0, %s78
      %s79 = sphi 0, %s76
      %s80 = sphi 0, %s79
      %s96 = sphi 0, %s80
      %s100 = sphi 0, %s100
      %s102 = sphi 0, %s100
      %s103 = sphi 0, %s102
      %s117 = sphi 0, %s103
      %s121 = sphi 0, %s121
      %s123 = sphi 0, %s121
      %s124 = sphi 0, %s123
      %s138 = sphi 0, %s124
      %s142 = sphi 0, %s142
      %s144 = sphi 0, %s142
      %s145 = sphi 0, %s144
      %s159 = sphi 0, %s145
      %s163 = sphi 0, %s163
      %s165 = sphi 0, %s163
      %s166 = sphi 0, %s165
      %s180 = sphi 0, %s166
      %s184 = sphi 0, %s184
      %s186 = sphi 0, %s184
      %s187 = sphi 0, %s186
      %s201 = sphi 0, %s187
      %s205 = sphi 0, %s205
      %s207 = sphi 0, %s205
      %s208 = sphi 0, %s207
      %s222 = sphi 0, %s208
      %s228 = sphi 0, %s230
      %s231 = sphi 0, %s228
      %s232 = sphi 0, %s231
      %s248 = sphi 0, %s232
    $region4: #{tpu_custom_call.1} parent=1 // loop_header_branch
      %22 = sbr.rel (%p20) target = $region8
    $region5: #{tpu_custom_call.1} parent=1 // loop_body
      %s24 = ssub.s32 %s19, 1
      %s25 = ssub.s32 %s19, 2
      %s26 = sadd.s32 %s19, 1
      %s28 = sadd.s32 %s27, 1
      %p31 = scmp.eq.s32.totalorder %s19, 1
      %p32 = scmp.ne.s32.totalorder %s27, %s29
      %p33 = scmp.eq.s32.totalorder %s19, 0
      %p34 = por %p32, %p33
      %p35 = scmp.ne.s32.totalorder %s27, %s29
      %p36 = scmp.eq.s32.totalorder %s24, 1
      %p37 = por %p35, %p36
      %p38 = scmp.ne.s32.totalorder %s29, %s30
      %p39 = scmp.eq.s32.totalorder %s24, 0
      %p40 = por %p38, %p39
      %p41 = scmp.ne.s32.totalorder %s29, %s30
      %p42 = scmp.eq.s32.totalorder %s25, 1
      %p43 = por %p41, %p42
      %p45 = scmp.ne.s32.totalorder %s30, %s44
      %p46 = scmp.eq.s32.totalorder %s25, 0
      %p47 = por %p45, %p46
      %s48 = ssub.s32 %s19, %s26
      %p49 = scmp.eq.s32.totalorder %s48, 0
      %s51 = sadd.s32 %s50, 1
      %s52 = scalar_select %p49, %s50, %s51
      %p55 = pneg %p49
      %p56 = scmp.eq.s32.totalorder %s19, 1
      %p57 = por %p55, %p56
      %p58 = scmp.ne.s32.totalorder %s50, %s53
      %p59 = scmp.eq.s32.totalorder %s19, 0
      %p60 = por %p58, %p59
      %p61 = scmp.ne.s32.totalorder %s50, %s53
      %p62 = scmp.eq.s32.totalorder %s24, 1
      %p63 = por %p61, %p62
      %p64 = scmp.ne.s32.totalorder %s53, %s54
      %p65 = scmp.eq.s32.totalorder %s24, 0
      %p66 = por %p64, %p65
      %p67 = scmp.ne.s32.totalorder %s53, %s54
      %p68 = scmp.eq.s32.totalorder %s25, 1
      %p69 = por %p67, %p68
      %p71 = scmp.ne.s32.totalorder %s54, %s70
      %p72 = scmp.eq.s32.totalorder %s25, 0
      %p73 = por %p71, %p72
      %s74 = ssub.s32 %s19, %s26
      %p75 = scmp.eq.s32.totalorder %s74, 0
      %s77 = sadd.s32 %s76, 1
      %s78 = scalar_select %p75, %s76, %s77
      %p81 = pneg %p75
      %p82 = scmp.eq.s32.totalorder %s19, 1
      %p83 = por %p81, %p82
      %p84 = scmp.ne.s32.totalorder %s76, %s79
      %p85 = scmp.eq.s32.totalorder %s19, 0
      %p86 = por %p84, %p85
      %p87 = scmp.ne.s32.totalorder %s76, %s79
      %p88 = scmp.eq.s32.totalorder %s24, 1
      %p89 = por %p87, %p88
      %p90 = scmp.ne.s32.totalorder %s79, %s80
      %p91 = scmp.eq.s32.totalorder %s24, 0
      %p92 = por %p90, %p91
      %p93 = scmp.ne.s32.totalorder %s79, %s80
      %p94 = scmp.eq.s32.totalorder %s25, 1
      %p95 = por %p93, %p94
      %p97 = scmp.ne.s32.totalorder %s80, %s96
      %p98 = scmp.eq.s32.totalorder %s25, 0
      %p99 = por %p97, %p98
      %s101 = sadd.s32 %s100, 1
      %p104 = scmp.eq.s32.totalorder %s19, 1
      %p105 = scmp.ne.s32.totalorder %s100, %s102
      %p106 = scmp.eq.s32.totalorder %s19, 0
      %p107 = por %p105, %p106
      %p108 = scmp.ne.s32.totalorder %s100, %s102
      %p109 = scmp.eq.s32.totalorder %s24, 1
      %p110 = por %p108, %p109
      %p111 = scmp.ne.s32.totalorder %s102, %s103
      %p112 = scmp.eq.s32.totalorder %s24, 0
      %p113 = por %p111, %p112
      %p114 = scmp.ne.s32.totalorder %s102, %s103
      %p115 = scmp.eq.s32.totalorder %s25, 1
      %p116 = por %p114, %p115
      %p118 = scmp.ne.s32.totalorder %s103, %s117
      %p119 = scmp.eq.s32.totalorder %s25, 0
      %p120 = por %p118, %p119
      %s122 = sadd.s32 %s121, 1
      %p125 = scmp.eq.s32.totalorder %s19, 1
      %p126 = scmp.ne.s32.totalorder %s121, %s123
      %p127 = scmp.eq.s32.totalorder %s19, 0
      %p128 = por %p126, %p127
      %p129 = scmp.ne.s32.totalorder %s121, %s123
      %p130 = scmp.eq.s32.totalorder %s24, 1
      %p131 = por %p129, %p130
      %p132 = scmp.ne.s32.totalorder %s123, %s124
      %p133 = scmp.eq.s32.totalorder %s24, 0
      %p134 = por %p132, %p133
      %p135 = scmp.ne.s32.totalorder %s123, %s124
      %p136 = scmp.eq.s32.totalorder %s25, 1
      %p137 = por %p135, %p136
      %p139 = scmp.ne.s32.totalorder %s124, %s138
      %p140 = scmp.eq.s32.totalorder %s25, 0
      %p141 = por %p139, %p140
      %s143 = sadd.s32 %s142, 1
      %p146 = scmp.eq.s32.totalorder %s19, 1
      %p147 = scmp.ne.s32.totalorder %s142, %s144
      %p148 = scmp.eq.s32.totalorder %s19, 0
      %p149 = por %p147, %p148
      %p150 = scmp.ne.s32.totalorder %s142, %s144
      %p151 = scmp.eq.s32.totalorder %s24, 1
      %p152 = por %p150, %p151
      %p153 = scmp.ne.s32.totalorder %s144, %s145
      %p154 = scmp.eq.s32.totalorder %s24, 0
      %p155 = por %p153, %p154
      %p156 = scmp.ne.s32.totalorder %s144, %s145
      %p157 = scmp.eq.s32.totalorder %s25, 1
      %p158 = por %p156, %p157
      %p160 = scmp.ne.s32.totalorder %s145, %s159
      %p161 = scmp.eq.s32.totalorder %s25, 0
      %p162 = por %p160, %p161
      %s164 = sadd.s32 %s163, 1
      %p167 = scmp.eq.s32.totalorder %s19, 1
      %p168 = scmp.ne.s32.totalorder %s163, %s165
      %p169 = scmp.eq.s32.totalorder %s19, 0
      %p170 = por %p168, %p169
      %p171 = scmp.ne.s32.totalorder %s163, %s165
      %p172 = scmp.eq.s32.totalorder %s24, 1
      %p173 = por %p171, %p172
      %p174 = scmp.ne.s32.totalorder %s165, %s166
      %p175 = scmp.eq.s32.totalorder %s24, 0
      %p176 = por %p174, %p175
      %p177 = scmp.ne.s32.totalorder %s165, %s166
      %p178 = scmp.eq.s32.totalorder %s25, 1
      %p179 = por %p177, %p178
      %p181 = scmp.ne.s32.totalorder %s166, %s180
      %p182 = scmp.eq.s32.totalorder %s25, 0
      %p183 = por %p181, %p182
      %s185 = sadd.s32 %s184, 1
      %p188 = scmp.eq.s32.totalorder %s19, 1
      %p189 = scmp.ne.s32.totalorder %s184, %s186
      %p190 = scmp.eq.s32.totalorder %s19, 0
      %p191 = por %p189, %p190
      %p192 = scmp.ne.s32.totalorder %s184, %s186
      %p193 = scmp.eq.s32.totalorder %s24, 1
      %p194 = por %p192, %p193
      %p195 = scmp.ne.s32.totalorder %s186, %s187
      %p196 = scmp.eq.s32.totalorder %s24, 0
      %p197 = por %p195, %p196
      %p198 = scmp.ne.s32.totalorder %s186, %s187
      %p199 = scmp.eq.s32.totalorder %s25, 1
      %p200 = por %p198, %p199
      %p202 = scmp.ne.s32.totalorder %s187, %s201
      %p203 = scmp.eq.s32.totalorder %s25, 0
      %p204 = por %p202, %p203
      %s206 = sadd.s32 %s205, 1
      %p209 = scmp.eq.s32.totalorder %s19, 1
      %p210 = scmp.ne.s32.totalorder %s205, %s207
      %p211 = scmp.eq.s32.totalorder %s19, 0
      %p212 = por %p210, %p211
      %p213 = scmp.ne.s32.totalorder %s205, %s207
      %p214 = scmp.eq.s32.totalorder %s24, 1
      %p215 = por %p213, %p214
      %p216 = scmp.ne.s32.totalorder %s207, %s208
      %p217 = scmp.eq.s32.totalorder %s24, 0
      %p218 = por %p216, %p217
      %p219 = scmp.ne.s32.totalorder %s207, %s208
      %p220 = scmp.eq.s32.totalorder %s25, 1
      %p221 = por %p219, %p220
      %p223 = scmp.ne.s32.totalorder %s208, %s222
      %p224 = scmp.eq.s32.totalorder %s25, 0
      %p225 = por %p223, %p224
      %s226 = ssub.s32 %s19, %s26
      %p227 = scmp.eq.s32.totalorder %s226, 0
      %s229 = sadd.s32 %s228, 1
      %s230 = scalar_select %p227, %s228, %s229
      %p233 = pneg %p227
      %p234 = scmp.eq.s32.totalorder %s19, 1
      %p235 = por %p233, %p234
      %p236 = scmp.ne.s32.totalorder %s228, %s231
      %p237 = scmp.eq.s32.totalorder %s19, 0
      %p238 = por %p236, %p237
      %p239 = scmp.ne.s32.totalorder %s228, %s231
      %p240 = scmp.eq.s32.totalorder %s24, 1
      %p241 = por %p239, %p240
      %p242 = scmp.ne.s32.totalorder %s231, %s232
      %p243 = scmp.eq.s32.totalorder %s24, 0
      %p244 = por %p242, %p243
      %p245 = scmp.ne.s32.totalorder %s231, %s232
      %p246 = scmp.eq.s32.totalorder %s25, 1
      %p247 = por %p245, %p246
      %p249 = scmp.ne.s32.totalorder %s232, %s248
      %p250 = scmp.eq.s32.totalorder %s25, 0
      %p251 = por %p249, %p250
      %p252 = scmp.le.s32.totalorder 1, %s19
      %p253 = scmp.lt.s32.totalorder %s19, 3
      %p254 = pnand %p252, %p253
      %p255 = pneg %p254
      // Predicated region
      $region9: #{tpu_custom_call.1} parent=5 // pred_check
        _
      $region10: #{tpu_custom_call.1} parent=5 // pred_check_branch
        %257 = sbr.rel (%p254) target = $region12
      $region11: #{tpu_custom_call.1} parent=5 // pred_region
        %s258 = ssub.s32 %s19, 1
        // Predicated region
        $region13: #{tpu_custom_call.1} parent=11 // pred_check
          %p259 = pneg %p40
        $region14: #{tpu_custom_call.1} parent=11 // pred_check_branch
          %261 = sbr.rel (%p259) target = $region16
        $region15: #{tpu_custom_call.1} parent=11 // pred_region
          _
        $region16: #{tpu_custom_call.1} parent=11 // pred_fallthru
          _
        // Predicated region
        $region17: #{tpu_custom_call.1} parent=11 // pred_check
          %p262 = pneg %p113
        $region18: #{tpu_custom_call.1} parent=11 // pred_check_branch
          %264 = sbr.rel (%p262) target = $region20
        $region19: #{tpu_custom_call.1} parent=11 // pred_region
          _
        $region20: #{tpu_custom_call.1} parent=11 // pred_fallthru
          _
        // Predicated region
        $region21: #{tpu_custom_call.1} parent=11 // pred_check
          %p265 = pneg %p134
        $region22: #{tpu_custom_call.1} parent=11 // pred_check_branch
          %267 = sbr.rel (%p265) target = $region24
        $region23: #{tpu_custom_call.1} parent=11 // pred_region
          _
        $region24: #{tpu_custom_call.1} parent=11 // pred_fallthru
          _
        // Predicated region
        $region25: #{tpu_custom_call.1} parent=11 // pred_check
          %p268 = pneg %p155
        $region26: #{tpu_custom_call.1} parent=11 // pred_check_branch
          %270 = sbr.rel (%p268) target = $region28
        $region27: #{tpu_custom_call.1} parent=11 // pred_region
          _
        $region28: #{tpu_custom_call.1} parent=11 // pred_fallthru
          _
        // Predicated region
        $region29: #{tpu_custom_call.1} parent=11 // pred_check
          %p271 = pneg %p176
        $region30: #{tpu_custom_call.1} parent=11 // pred_check_branch
          %273 = sbr.rel (%p271) target = $region32
        $region31: #{tpu_custom_call.1} parent=11 // pred_region
          _
        $region32: #{tpu_custom_call.1} parent=11 // pred_fallthru
          _
        // Predicated region
        $region33: #{tpu_custom_call.1} parent=11 // pred_check
          %p274 = pneg %p197
        $region34: #{tpu_custom_call.1} parent=11 // pred_check_branch
          %276 = sbr.rel (%p274) target = $region36
        $region35: #{tpu_custom_call.1} parent=11 // pred_region
          _
        $region36: #{tpu_custom_call.1} parent=11 // pred_fallthru
          _
        // Predicated region
        $region37: #{tpu_custom_call.1} parent=11 // pred_check
          %p277 = pneg %p218
        $region38: #{tpu_custom_call.1} parent=11 // pred_check_branch
          %279 = sbr.rel (%p277) target = $region40
        $region39: #{tpu_custom_call.1} parent=11 // pred_region
          _
        $region40: #{tpu_custom_call.1} parent=11 // pred_fallthru
          _
      $region12: #{tpu_custom_call.1} parent=5 // pred_fallthru
        _
      %p280 = scmp.lt.s32.totalorder %s19, 2
      // Predicated region
      $region41: #{tpu_custom_call.1} parent=5 // pred_check
        %p281 = pneg %p280
      $region42: #{tpu_custom_call.1} parent=5 // pred_check_branch
        %283 = sbr.rel (%p281) target = $region44
      $region43: #{tpu_custom_call.1} parent=5 // pred_region
        // Predicated region
        $region45: #{tpu_custom_call.1} parent=43 // pred_check
          %p284 = pneg %p60
        $region46: #{tpu_custom_call.1} parent=43 // pred_check_branch
          %286 = sbr.rel (%p284) target = $region48
        $region47: #{tpu_custom_call.1} parent=43 // pred_region
          %p287 = scmp.lt.s32.totalorder %s19, 1
          %s288 = scalar_select %p287, %s19, 1
          %s289 = smul.addr %s288, 2
          %s290 = smul.addr %s289, 8
          %s291 = scalar_lea.vmem %s1, %s290
        $region48: #{tpu_custom_call.1} parent=43 // pred_fallthru
          _
        // Predicated region
        $region49: #{tpu_custom_call.1} parent=43 // pred_check
          %p292 = pneg %p86
        $region50: #{tpu_custom_call.1} parent=43 // pred_check_branch
          %294 = sbr.rel (%p292) target = $region52
        $region51: #{tpu_custom_call.1} parent=43 // pred_region
          %p295 = scmp.lt.s32.totalorder %s19, 1
          %s296 = scalar_select %p295, %s19, 1
          %s297 = scalar_lea.vmem %s2, %s296
        $region52: #{tpu_custom_call.1} parent=43 // pred_fallthru
          _
      $region44: #{tpu_custom_call.1} parent=5 // pred_fallthru
        _
      %p298 = scmp.le.s32.totalorder 1, %s19
      %p299 = scmp.lt.s32.totalorder %s19, 3
      %p300 = pnand %p298, %p299
      %p301 = pneg %p300
      // Predicated region
      $region53: #{tpu_custom_call.1} parent=5 // pred_check
        _
      $region54: #{tpu_custom_call.1} parent=5 // pred_check_branch
        %303 = sbr.rel (%p300) target = $region56
      $region55: #{tpu_custom_call.1} parent=5 // pred_region
        %s304 = ssub.s32 %s19, 1
        %p305 = pneg %p40
        %p306 = pneg %p37
        %p307 = scmp.lt.s32.totalorder %s24, 1
        %s308 = scalar_select %p307, %s24, 1
        %s309 = smul.addr %s308, 2
        %s310 = smul.addr %s309, 8
        %s311 = scalar_lea.vmem %s1, %s310
        %p312 = pneg %p66
        %p313 = pneg %p63
        %p314 = scmp.lt.s32.totalorder %s24, 1
        %s315 = scalar_select %p314, %s24, 1
        %s316 = scalar_lea.vmem %s2, %s315
        %p317 = pneg %p92
        %p318 = pneg %p89
        %p319 = pneg %p113
        %p320 = pneg %p110
        %p321 = pneg %p134
        %p322 = pneg %p131
        %p323 = pneg %p155
        %p324 = pneg %p152
        %p325 = pneg %p176
        %p326 = pneg %p173
        %p327 = pneg %p197
        %p328 = pneg %p194
        %p329 = pneg %p218
        %p330 = pneg %p215
        %p331 = pneg %p244
        %p332 = pneg %p241
        %s333 = sand.u32 %s231, 1
        %s334 = scalar_lea.sflag [#allocation5], %s333
        %s335 = sand.u32 %s231, 1
        %s336 = scalar_lea.vmem [#allocation4], %s335
        %p337 = scmp.lt.s32.totalorder %s24, 1
        %s338 = scalar_select %p337, %s24, 1
        %s339 = smul.addr %s338, 2
        %s340 = smul.addr %s339, 8
        %s341 = scalar_lea.vmem %s1, %s340
        %p342 = scmp.lt.s32.totalorder %s24, 1
        %s343 = scalar_select %p342, %s24, 1
        %s344 = scalar_lea.vmem %s2, %s343
        %v345 = vld [vmem:[%s0] sm:$0xff]
        %v346 = vld [vmem:[%s341] sm:$0xff]
        %v347 = vld [vmem:[%s341 + $0x8] sm:$0xff]
        %v348 = vld [vmem:[%s344] sm:$0x1]
        %v349 = vld [vmem:[%s3] sm:$0xff]
        %v350 = vld [vmem:[%s3 + $0x8] sm:$0xff]
        %v351 = vld [vmem:[%s3 + $0x10] sm:$0xff]
        %v352 = vld [vmem:[%s3 + $0x18] sm:$0xff]
        %v353 = vld [vmem:[%s3 + $0x20] sm:$0xff]
        %v354 = vld [vmem:[%s3 + $0x28] sm:$0xff]
        %v355 = vld [vmem:[%s3 + $0x30] sm:$0xff]
        %v356 = vld [vmem:[%s3 + $0x38] sm:$0xff]
        %vm357 = vcmask 261120
        %v359 = vsel %vm357, %v345, 0
        %361 = vmatprep.subr.mxu0 %v350
        %362 = vmatpush1.msra.mxu0 %v349
        %363 = vmatprep.subr.mxu0 %v352
        %364 = vmatpush1.msra.mxu0 %v351
        %365 = vmatprep.subr.mxu0 %v354
        %366 = vmatpush1.msra.mxu0 %v353
        %367 = vmatprep.subr.mxu0 %v356
        %368 = vmatpush1.msra.mxu0 %v355
        %369 = vmatprep.subr.mxu0 0.0
        %370 = vmatpush1.msra.mxu0 0.0
        %371 = vmatprep.subr.mxu0 0.0
        %372 = vmatpush1.msra.mxu0 0.0
        %373 = vmatprep.subr.mxu0 0.0
        %374 = vmatpush1.msra.mxu0 0.0
        %375 = vmatprep.subr.mxu0 0.0
        %376 = vmatpush1.msra.mxu0 0.0
        %377 = vmatprep.subr.mxu0 0.0
        %378 = vmatpush1.msra.mxu0 0.0
        %379 = vmatprep.subr.mxu0 0.0
        %380 = vmatpush1.msra.mxu0 0.0
        %381 = vmatprep.subr.mxu0 0.0
        %382 = vmatpush1.msra.mxu0 0.0
        %383 = vmatprep.subr.mxu0 0.0
        %384 = vmatpush1.msra.mxu0 0.0
        %385 = vmatprep.subr.mxu0 0.0
        %386 = vmatpush1.msra.mxu0 0.0
        %387 = vmatprep.subr.mxu0 0.0
        %388 = vmatpush1.msra.mxu0 0.0
        %389 = vmatprep.subr.mxu0 0.0
        %390 = vmatpush1.msra.mxu0 0.0
        %391 = vmatprep.subr.mxu0 0.0
        %392 = vmatpush1.msra.mxu0 0.0
        %393 = vmatprep.subr.mxu0 0.0
        %394 = vmatpush1.msra.mxu0 0.0
        %395 = vmatprep.subr.mxu0 0.0
        %396 = vmatpush1.msra.mxu0 0.0
        %397 = vmatprep.subr.mxu0 0.0
        %398 = vmatpush1.msra.mxu0 0.0
        %399 = vmatprep.subr.mxu0 0.0
        %400 = vmatpush1.msra.mxu0 0.0
        %401 = vmatprep.subr.mxu0 0.0
        %402 = vmatpush1.msra.mxu0 0.0
        %403 = vmatprep.subr.mxu0 0.0
        %404 = vmatpush1.msra.mxu0 0.0
        %405 = vmatprep.subr.mxu0 0.0
        %406 = vmatpush1.msra.mxu0 0.0
        %407 = vmatprep.subr.mxu0 0.0
        %408 = vmatpush1.msra.mxu0 0.0
        %409 = vmatprep.subr.mxu0 0.0
        %410 = vmatpush1.msra.mxu0 0.0
        %411 = vmatprep.subr.mxu0 0.0
        %412 = vmatpush1.msra.mxu0 0.0
        %413 = vmatprep.subr.mxu0 0.0
        %414 = vmatpush1.msra.mxu0 0.0
        %415 = vmatprep.subr.mxu0 0.0
        %416 = vmatpush1.msra.mxu0 0.0
        %417 = vmatprep.subr.mxu0 0.0
        %418 = vmatpush1.msra.mxu0 0.0
        %419 = vmatprep.subr.mxu0 0.0
        %420 = vmatpush1.msra.mxu0 0.0
        %421 = vmatprep.subr.mxu0 0.0
        %422 = vmatpush1.msra.mxu0 0.0
        %423 = vmatprep.subr.mxu0 0.0
        %424 = vmatpush1.msra.mxu0 0.0
        %425 = vmatprep.mubr.f32.mxu0 0.0
        %426 = vmatmul.mubr.f32.gmra.mrb[0].mxu0 %v359
        %v427 = vpop.f32.mrb[0].mxu0
        %v428 = vadd.f32 0.0, %v427
        %v429 = vpop.f32.mrb[0].mxu0
        %v430 = vadd.f32 0.0, %v429
        %431 = vdwg.mxu0
        %v432 = vmul.f32 %v428, 0.17677669
        %v433 = vmul.f32 %v430, 0.17677669
        %v434 = vld [vmem:[%s4] sm:$0xff]
        %v435 = vld [vmem:[%s4 + $0x8] sm:$0xff]
        %v436 = vld [vmem:[%s4 + $0x10] sm:$0xff]
        %v437 = vld [vmem:[%s4 + $0x18] sm:$0xff]
        %v438 = vld [vmem:[%s4 + $0x20] sm:$0xff]
        %v439 = vld [vmem:[%s4 + $0x28] sm:$0xff]
        %v440 = vld [vmem:[%s4 + $0x30] sm:$0xff]
        %v441 = vld [vmem:[%s4 + $0x38] sm:$0xff]
        %v443 = vsel %vm357, %v346, 0
        %v446 = vsel %vm357, %v347, 0
        %448 = vmatprep.subr.mxu0 %v435
        %449 = vmatpush1.msra.mxu0 %v434
        %450 = vmatprep.subr.mxu0 %v437
        %451 = vmatpush1.msra.mxu0 %v436
        %452 = vmatprep.subr.mxu0 %v439
        %453 = vmatpush1.msra.mxu0 %v438
        %454 = vmatprep.subr.mxu0 %v441
        %455 = vmatpush1.msra.mxu0 %v440
        %456 = vmatprep.subr.mxu0 0.0
        %457 = vmatpush1.msra.mxu0 0.0
        %458 = vmatprep.subr.mxu0 0.0
        %459 = vmatpush1.msra.mxu0 0.0
        %460 = vmatprep.subr.mxu0 0.0
        %461 = vmatpush1.msra.mxu0 0.0
        %462 = vmatprep.subr.mxu0 0.0
        %463 = vmatpush1.msra.mxu0 0.0
        %464 = vmatprep.subr.mxu0 0.0
        %465 = vmatpush1.msra.mxu0 0.0
        %466 = vmatprep.subr.mxu0 0.0
        %467 = vmatpush1.msra.mxu0 0.0
        %468 = vmatprep.subr.mxu0 0.0
        %469 = vmatpush1.msra.mxu0 0.0
        %470 = vmatprep.subr.mxu0 0.0
        %471 = vmatpush1.msra.mxu0 0.0
        %472 = vmatprep.subr.mxu0 0.0
        %473 = vmatpush1.msra.mxu0 0.0
        %474 = vmatprep.subr.mxu0 0.0
        %475 = vmatpush1.msra.mxu0 0.0
        %476 = vmatprep.subr.mxu0 0.0
        %477 = vmatpush1.msra.mxu0 0.0
        %478 = vmatprep.subr.mxu0 0.0
        %479 = vmatpush1.msra.mxu0 0.0
        %480 = vmatprep.subr.mxu0 0.0
        %481 = vmatpush1.msra.mxu0 0.0
        %482 = vmatprep.subr.mxu0 0.0
        %483 = vmatpush1.msra.mxu0 0.0
        %484 = vmatprep.subr.mxu0 0.0
        %485 = vmatpush1.msra.mxu0 0.0
        %486 = vmatprep.subr.mxu0 0.0
        %487 = vmatpush1.msra.mxu0 0.0
        %488 = vmatprep.subr.mxu0 0.0
        %489 = vmatpush1.msra.mxu0 0.0
        %490 = vmatprep.subr.mxu0 0.0
        %491 = vmatpush1.msra.mxu0 0.0
        %492 = vmatprep.subr.mxu0 0.0
        %493 = vmatpush1.msra.mxu0 0.0
        %494 = vmatprep.subr.mxu0 0.0
        %495 = vmatpush1.msra.mxu0 0.0
        %496 = vmatprep.subr.mxu0 0.0
        %497 = vmatpush1.msra.mxu0 0.0
        %498 = vmatprep.subr.mxu0 0.0
        %499 = vmatpush1.msra.mxu0 0.0
        %500 = vmatprep.subr.mxu0 0.0
        %501 = vmatpush1.msra.mxu0 0.0
        %502 = vmatprep.subr.mxu0 0.0
        %503 = vmatpush1.msra.mxu0 0.0
        %504 = vmatprep.subr.mxu0 0.0
        %505 = vmatpush1.msra.mxu0 0.0
        %506 = vmatprep.subr.mxu0 0.0
        %507 = vmatpush1.msra.mxu0 0.0
        %508 = vmatprep.subr.mxu0 0.0
        %509 = vmatpush1.msra.mxu0 0.0
        %510 = vmatprep.subr.mxu0 0.0
        %511 = vmatpush1.msra.mxu0 0.0
        %512 = vmatprep.mubr.f32.mxu0 0.0
        %513 = vmatmul.mubr.f32.gmra.mrb[0].mxu0 %v443
        %v514 = vpop.f32.mrb[0].mxu0
        %v515 = vadd.f32 0.0, %v514
        %v516 = vpop.f32.mrb[0].mxu0
        %v517 = vadd.f32 0.0, %v516
        %518 = vmatprep.mubr.f32.mxu0 0.0
        %519 = vmatmul.mubr.f32.gmra.mrb[0].mxu0 %v446
        %v520 = vpop.f32.mrb[0].mxu0
        %v521 = vadd.f32 0.0, %v520
        %v522 = vpop.f32.mrb[0].mxu0
        %v523 = vadd.f32 0.0, %v522
        %524 = vdwg.mxu0
        %v525 = vld [vmem:[%s5] sm:$0xff]
        %v526 = vld [vmem:[%s5 + $0x8] sm:$0xff]
        %v527 = vld [vmem:[%s5 + $0x10] sm:$0xff]
        %v528 = vld [vmem:[%s5 + $0x18] sm:$0xff]
        %v529 = vld [vmem:[%s5 + $0x20] sm:$0xff]
        %v530 = vld [vmem:[%s5 + $0x28] sm:$0xff]
        %v531 = vld [vmem:[%s5 + $0x30] sm:$0xff]
        %v532 = vld [vmem:[%s5 + $0x38] sm:$0xff]
        %533 = vmatprep.subr.mxu0 %v526
        %534 = vmatpush1.msra.mxu0 %v525
        %535 = vmatprep.subr.mxu0 %v528
        %536 = vmatpush1.msra.mxu0 %v527
        %537 = vmatprep.subr.mxu0 %v530
        %538 = vmatpush1.msra.mxu0 %v529
        %539 = vmatprep.subr.mxu0 %v532
        %540 = vmatpush1.msra.mxu0 %v531
        %541 = vmatprep.subr.mxu0 0.0
        %542 = vmatpush1.msra.mxu0 0.0
        %543 = vmatprep.subr.mxu0 0.0
        %544 = vmatpush1.msra.mxu0 0.0
        %545 = vmatprep.subr.mxu0 0.0
        %546 = vmatpush1.msra.mxu0 0.0
        %547 = vmatprep.subr.mxu0 0.0
        %548 = vmatpush1.msra.mxu0 0.0
        %549 = vmatprep.subr.mxu0 0.0
        %550 = vmatpush1.msra.mxu0 0.0
        %551 = vmatprep.subr.mxu0 0.0
        %552 = vmatpush1.msra.mxu0 0.0
        %553 = vmatprep.subr.mxu0 0.0
        %554 = vmatpush1.msra.mxu0 0.0
        %555 = vmatprep.subr.mxu0 0.0
        %556 = vmatpush1.msra.mxu0 0.0
        %557 = vmatprep.subr.mxu0 0.0
        %558 = vmatpush1.msra.mxu0 0.0
        %559 = vmatprep.subr.mxu0 0.0
        %560 = vmatpush1.msra.mxu0 0.0
        %561 = vmatprep.subr.mxu0 0.0
        %562 = vmatpush1.msra.mxu0 0.0
        %563 = vmatprep.subr.mxu0 0.0
        %564 = vmatpush1.msra.mxu0 0.0
        %565 = vmatprep.subr.mxu0 0.0
        %566 = vmatpush1.msra.mxu0 0.0
        %567 = vmatprep.subr.mxu0 0.0
        %568 = vmatpush1.msra.mxu0 0.0
        %569 = vmatprep.subr.mxu0 0.0
        %570 = vmatpush1.msra.mxu0 0.0
        %571 = vmatprep.subr.mxu0 0.0
        %572 = vmatpush1.msra.mxu0 0.0
        %573 = vmatprep.subr.mxu0 0.0
        %574 = vmatpush1.msra.mxu0 0.0
        %575 = vmatprep.subr.mxu0 0.0
        %576 = vmatpush1.msra.mxu0 0.0
        %577 = vmatprep.subr.mxu0 0.0
        %578 = vmatpush1.msra.mxu0 0.0
        %579 = vmatprep.subr.mxu0 0.0
        %580 = vmatpush1.msra.mxu0 0.0
        %581 = vmatprep.subr.mxu0 0.0
        %582 = vmatpush1.msra.mxu0 0.0
        %583 = vmatprep.subr.mxu0 0.0
        %584 = vmatpush1.msra.mxu0 0.0
        %585 = vmatprep.subr.mxu0 0.0
        %586 = vmatpush1.msra.mxu0 0.0
        %587 = vmatprep.subr.mxu0 0.0
        %588 = vmatpush1.msra.mxu0 0.0
        %589 = vmatprep.subr.mxu0 0.0
        %590 = vmatpush1.msra.mxu0 0.0
        %591 = vmatprep.subr.mxu0 0.0
        %592 = vmatpush1.msra.mxu0 0.0
        %593 = vmatprep.subr.mxu0 0.0
        %594 = vmatpush1.msra.mxu0 0.0
        %595 = vmatprep.subr.mxu0 0.0
        %596 = vmatpush1.msra.mxu0 0.0
        %597 = vmatprep.mubr.f32.mxu0 0.0
        %598 = vmatmul.mubr.f32.gmra.mrb[0].mxu0 %v443
        %v599 = vpop.f32.mrb[0].mxu0
        %v600 = vadd.f32 0.0, %v599
        %v601 = vpop.f32.mrb[0].mxu0
        %v602 = vadd.f32 0.0, %v601
        %603 = vmatprep.mubr.f32.mxu0 0.0
        %604 = vmatmul.mubr.f32.gmra.mrb[0].mxu0 %v446
        %v605 = vpop.f32.mrb[0].mxu0
        %v606 = vadd.f32 0.0, %v605
        %v607 = vpop.f32.mrb[0].mxu0
        %v608 = vadd.f32 0.0, %v607
        %609 = vdwg.mxu0
        %vm610 = vcmp.gt.f32.partialorder %v348, 0.5
        %v611 = vsel %vm610, -3.4028235e+38, 0.0
        %v613 = vlaneseq
        %v614 = vshrl.u32 %v613, 7
        %v615 = vsub.s32 0, %v614
        %v616 = vrot.slane %v611, %v615
        %v619 = vsel %vm357, %v432, 0
        %v622 = vsel %vm357, %v515, 0
        %v625 = vsel %vm357, %v521, 0
        %627 = vmatprep.subr.mxu0 0.0
        %628 = vmatpush1.xpose.msra.mxu0 %v622
        %629 = vmatprep.subr.mxu0 0.0
        %630 = vmatpush1.xpose.msra.mxu0 %v625
        %631 = vmatprep.subr.mxu0 0.0
        %632 = vmatpush1.xpose.msra.mxu0 0.0
        %633 = vmatprep.subr.mxu0 0.0
        %634 = vmatpush1.xpose.msra.mxu0 0.0
        %635 = vmatprep.subr.mxu0 0.0
        %636 = vmatpush1.xpose.msra.mxu0 0.0
        %637 = vmatprep.subr.mxu0 0.0
        %638 = vmatpush1.xpose.msra.mxu0 0.0
        %639 = vmatprep.subr.mxu0 0.0
        %640 = vmatpush1.xpose.msra.mxu0 0.0
        %641 = vmatprep.subr.mxu0 0.0
        %642 = vmatpush1.xpose.msra.mxu0 0.0
        %643 = vmatprep.subr.mxu0 0.0
        %644 = vmatpush1.xpose.msra.mxu0 0.0
        %645 = vmatprep.subr.mxu0 0.0
        %646 = vmatpush1.xpose.msra.mxu0 0.0
        %647 = vmatprep.subr.mxu0 0.0
        %648 = vmatpush1.xpose.msra.mxu0 0.0
        %649 = vmatprep.subr.mxu0 0.0
        %650 = vmatpush1.xpose.msra.mxu0 0.0
        %651 = vmatprep.subr.mxu0 0.0
        %652 = vmatpush1.xpose.msra.mxu0 0.0
        %653 = vmatprep.subr.mxu0 0.0
        %654 = vmatpush1.xpose.msra.mxu0 0.0
        %655 = vmatprep.subr.mxu0 0.0
        %656 = vmatpush1.xpose.msra.mxu0 0.0
        %657 = vmatprep.subr.mxu0 0.0
        %658 = vmatpush1.xpose.msra.mxu0 0.0
        %659 = vmatprep.subr.mxu0 0.0
        %660 = vmatpush1.xpose.msra.mxu0 0.0
        %661 = vmatprep.subr.mxu0 0.0
        %662 = vmatpush1.xpose.msra.mxu0 0.0
        %663 = vmatprep.subr.mxu0 0.0
        %664 = vmatpush1.xpose.msra.mxu0 0.0
        %665 = vmatprep.subr.mxu0 0.0
        %666 = vmatpush1.xpose.msra.mxu0 0.0
        %667 = vmatprep.subr.mxu0 0.0
        %668 = vmatpush1.xpose.msra.mxu0 0.0
        %669 = vmatprep.subr.mxu0 0.0
        %670 = vmatpush1.xpose.msra.mxu0 0.0
        %671 = vmatprep.subr.mxu0 0.0
        %672 = vmatpush1.xpose.msra.mxu0 0.0
        %673 = vmatprep.subr.mxu0 0.0
        %674 = vmatpush1.xpose.msra.mxu0 0.0
        %675 = vmatprep.subr.mxu0 0.0
        %676 = vmatpush1.xpose.msra.mxu0 0.0
        %677 = vmatprep.subr.mxu0 0.0
        %678 = vmatpush1.xpose.msra.mxu0 0.0
        %679 = vmatprep.subr.mxu0 0.0
        %680 = vmatpush1.xpose.msra.mxu0 0.0
        %681 = vmatprep.subr.mxu0 0.0
        %682 = vmatpush1.xpose.msra.mxu0 0.0
        %683 = vmatprep.subr.mxu0 0.0
        %684 = vmatpush1.xpose.msra.mxu0 0.0
        %685 = vmatprep.subr.mxu0 0.0
        %686 = vmatpush1.xpose.msra.mxu0 0.0
        %687 = vmatprep.subr.mxu0 0.0
        %688 = vmatpush1.xpose.msra.mxu0 0.0
        %689 = vmatprep.subr.mxu0 0.0
        %690 = vmatpush1.xpose.msra.mxu0 0.0
        %691 = vmatprep.mubr.f32.mxu0 0.0
        %692 = vmatmul.mubr.f32.gmra.mrb[0].mxu0 %v619
        %v693 = vpop.f32.mrb[0].mxu0
        %v694 = vadd.f32 %v616, %v693
        %v695 = vpop.f32.mrb[0].mxu0
        %696 = vdwg.mxu0
        %vm697 = vcmask 130048
        %v698 = vsel %vm697, %v694, -inf
        %699 = vmax.xlane.f32.xlu0 %v698
        %v700 = vpop.xlane.xlu0 %699
        %v701 = vsub.f32 %v694, %v700
        %v702 = vmul.f32 %v701, 1.442695
        %v703 = vpow.pop %v702
        %v704 = vsel %vm697, %v703, 0.0
        %705 = vadd.xlane.f32.xlu0 %v704
        %v706 = vpop.xlane.xlu0 %705
        %v707 = vrcp.pop %v706
        %v708 = vmul.f32 %v703, %v707
        %v710 = vsel %vm697, %v708, 0
        %712 = vmatprep.subr.mxu0 0.0
        %713 = vmatpush1.msra.mxu0 %v600
        %714 = vmatprep.subr.mxu0 0.0
        %715 = vmatpush1.msra.mxu0 %v606
        %716 = vmatprep.subr.mxu0 0.0
        %717 = vmatpush1.msra.mxu0 0.0
        %718 = vmatprep.subr.mxu0 0.0
        %719 = vmatpush1.msra.mxu0 0.0
        %720 = vmatprep.subr.mxu0 0.0
        %721 = vmatpush1.msra.mxu0 0.0
        %722 = vmatprep.subr.mxu0 0.0
        %723 = vmatpush1.msra.mxu0 0.0
        %724 = vmatprep.subr.mxu0 0.0
        %725 = vmatpush1.msra.mxu0 0.0
        %726 = vmatprep.subr.mxu0 0.0
        %727 = vmatpush1.msra.mxu0 0.0
        %728 = vmatprep.subr.mxu0 0.0
        %729 = vmatpush1.msra.mxu0 0.0
        %730 = vmatprep.subr.mxu0 0.0
        %731 = vmatpush1.msra.mxu0 0.0
        %732 = vmatprep.subr.mxu0 0.0
        %733 = vmatpush1.msra.mxu0 0.0
        %734 = vmatprep.subr.mxu0 0.0
        %735 = vmatpush1.msra.mxu0 0.0
        %736 = vmatprep.subr.mxu0 0.0
        %737 = vmatpush1.msra.mxu0 0.0
        %738 = vmatprep.subr.mxu0 0.0
        %739 = vmatpush1.msra.mxu0 0.0
        %740 = vmatprep.subr.mxu0 0.0
        %741 = vmatpush1.msra.mxu0 0.0
        %742 = vmatprep.subr.mxu0 0.0
        %743 = vmatpush1.msra.mxu0 0.0
        %744 = vmatprep.subr.mxu0 0.0
        %745 = vmatpush1.msra.mxu0 0.0
        %746 = vmatprep.subr.mxu0 0.0
        %747 = vmatpush1.msra.mxu0 0.0
        %748 = vmatprep.subr.mxu0 0.0
        %749 = vmatpush1.msra.mxu0 0.0
        %750 = vmatprep.subr.mxu0 0.0
        %751 = vmatpush1.msra.mxu0 0.0
        %752 = vmatprep.subr.mxu0 0.0
        %753 = vmatpush1.msra.mxu0 0.0
        %754 = vmatprep.subr.mxu0 0.0
        %755 = vmatpush1.msra.mxu0 0.0
        %756 = vmatprep.subr.mxu0 0.0
        %757 = vmatpush1.msra.mxu0 0.0
        %758 = vmatprep.subr.mxu0 0.0
        %759 = vmatpush1.msra.mxu0 0.0
        %760 = vmatprep.subr.mxu0 0.0
        %761 = vmatpush1.msra.mxu0 0.0
        %762 = vmatprep.subr.mxu0 0.0
        %763 = vmatpush1.msra.mxu0 0.0
        %764 = vmatprep.subr.mxu0 0.0
        %765 = vmatpush1.msra.mxu0 0.0
        %766 = vmatprep.subr.mxu0 0.0
        %767 = vmatpush1.msra.mxu0 0.0
        %768 = vmatprep.subr.mxu0 0.0
        %769 = vmatpush1.msra.mxu0 0.0
        %770 = vmatprep.subr.mxu0 0.0
        %771 = vmatpush1.msra.mxu0 0.0
        %772 = vmatprep.subr.mxu0 0.0
        %773 = vmatpush1.msra.mxu0 0.0
        %774 = vmatprep.subr.mxu0 0.0
        %775 = vmatpush1.msra.mxu0 0.0
        %776 = vmatprep.mubr.f32.mxu0 0.0
        %777 = vmatmul.mubr.f32.gmra.mrb[0].mxu0 %v710
        %v778 = vpop.f32.mrb[0].mxu0
        %v779 = vadd.f32 0.0, %v778
        %v780 = vpop.f32.mrb[0].mxu0
        %781 = vdwg.mxu0
        %782 = vst.msk [vmem:[#allocation2] sm:$0xff] %vm357, %v779
        %783 = vrot.lane.b32.xlu0 %v432, 96
        %v784 = vpop.permute.xlu0 %783
        %785 = vrot.lane.b32.xlu0 %v515, 96
        %v786 = vpop.permute.xlu0 %785
        %787 = vrot.lane.b32.xlu0 %v521, 96
        %v788 = vpop.permute.xlu0 %787
        %v789 = vsel %vm357, %v784, 0
        %v791 = vsel %vm357, %v786, 0
        %v793 = vsel %vm357, %v788, 0
        %795 = vmatprep.subr.mxu0 0.0
        %796 = vmatpush1.xpose.msra.mxu0 %v791
        %797 = vmatprep.subr.mxu0 0.0
        %798 = vmatpush1.xpose.msra.mxu0 %v793
        %799 = vmatprep.subr.mxu0 0.0
        %800 = vmatpush1.xpose.msra.mxu0 0.0
        %801 = vmatprep.subr.mxu0 0.0
        %802 = vmatpush1.xpose.msra.mxu0 0.0
        %803 = vmatprep.subr.mxu0 0.0
        %804 = vmatpush1.xpose.msra.mxu0 0.0
        %805 = vmatprep.subr.mxu0 0.0
        %806 = vmatpush1.xpose.msra.mxu0 0.0
        %807 = vmatprep.subr.mxu0 0.0
        %808 = vmatpush1.xpose.msra.mxu0 0.0
        %809 = vmatprep.subr.mxu0 0.0
        %810 = vmatpush1.xpose.msra.mxu0 0.0
        %811 = vmatprep.subr.mxu0 0.0
        %812 = vmatpush1.xpose.msra.mxu0 0.0
        %813 = vmatprep.subr.mxu0 0.0
        %814 = vmatpush1.xpose.msra.mxu0 0.0
        %815 = vmatprep.subr.mxu0 0.0
        %816 = vmatpush1.xpose.msra.mxu0 0.0
        %817 = vmatprep.subr.mxu0 0.0
        %818 = vmatpush1.xpose.msra.mxu0 0.0
        %819 = vmatprep.subr.mxu0 0.0
        %820 = vmatpush1.xpose.msra.mxu0 0.0
        %821 = vmatprep.subr.mxu0 0.0
        %822 = vmatpush1.xpose.msra.mxu0 0.0
        %823 = vmatprep.subr.mxu0 0.0
        %824 = vmatpush1.xpose.msra.mxu0 0.0
        %825 = vmatprep.subr.mxu0 0.0
        %826 = vmatpush1.xpose.msra.mxu0 0.0
        %827 = vmatprep.subr.mxu0 0.0
        %828 = vmatpush1.xpose.msra.mxu0 0.0
        %829 = vmatprep.subr.mxu0 0.0
        %830 = vmatpush1.xpose.msra.mxu0 0.0
        %831 = vmatprep.subr.mxu0 0.0
        %832 = vmatpush1.xpose.msra.mxu0 0.0
        %833 = vmatprep.subr.mxu0 0.0
        %834 = vmatpush1.xpose.msra.mxu0 0.0
        %835 = vmatprep.subr.mxu0 0.0
        %836 = vmatpush1.xpose.msra.mxu0 0.0
        %837 = vmatprep.subr.mxu0 0.0
        %838 = vmatpush1.xpose.msra.mxu0 0.0
        %839 = vmatprep.subr.mxu0 0.0
        %840 = vmatpush1.xpose.msra.mxu0 0.0
        %841 = vmatprep.subr.mxu0 0.0
        %842 = vmatpush1.xpose.msra.mxu0 0.0
        %843 = vmatprep.subr.mxu0 0.0
        %844 = vmatpush1.xpose.msra.mxu0 0.0
        %845 = vmatprep.subr.mxu0 0.0
        %846 = vmatpush1.xpose.msra.mxu0 0.0
        %847 = vmatprep.subr.mxu0 0.0
        %848 = vmatpush1.xpose.msra.mxu0 0.0
        %849 = vmatprep.subr.mxu0 0.0
        %850 = vmatpush1.xpose.msra.mxu0 0.0
        %851 = vmatprep.subr.mxu0 0.0
        %852 = vmatpush1.xpose.msra.mxu0 0.0
        %853 = vmatprep.subr.mxu0 0.0
        %854 = vmatpush1.xpose.msra.mxu0 0.0
        %855 = vmatprep.subr.mxu0 0.0
        %856 = vmatpush1.xpose.msra.mxu0 0.0
        %857 = vmatprep.subr.mxu0 0.0
        %858 = vmatpush1.xpose.msra.mxu0 0.0
        %859 = vmatprep.mubr.f32.mxu0 0.0
        %860 = vmatmul.mubr.f32.gmra.mrb[0].mxu0 %v789
        %v861 = vpop.f32.mrb[0].mxu0
        %v862 = vadd.f32 %v616, %v861
        %v863 = vpop.f32.mrb[0].mxu0
        %864 = vdwg.mxu0
        %v865 = vsel %vm697, %v862, -inf
        %866 = vmax.xlane.f32.xlu0 %v865
        %v867 = vpop.xlane.xlu0 %866
        %v868 = vsub.f32 %v862, %v867
        %v869 = vmul.f32 %v868, 1.442695
        %v870 = vpow.pop %v869
        %v871 = vsel %vm697, %v870, 0.0
        %872 = vadd.xlane.f32.xlu0 %v871
        %v873 = vpop.xlane.xlu0 %872
        %v874 = vrcp.pop %v873
        %v875 = vmul.f32 %v870, %v874
        %878 = vrot.lane.b32.xlu0 %v600, 96
        %v879 = vpop.permute.xlu0 %878
        %880 = vrot.lane.b32.xlu0 %v606, 96
        %v881 = vpop.permute.xlu0 %880
        %v885 = vsel %vm697, %v875, 0
        %887 = vmatprep.subr.mxu0 0.0
        %888 = vmatpush1.msra.mxu0 %v879
        %889 = vmatprep.subr.mxu0 0.0
        %890 = vmatpush1.msra.mxu0 %v881
        %891 = vmatprep.subr.mxu0 0.0
        %892 = vmatpush1.msra.mxu0 0.0
        %893 = vmatprep.subr.mxu0 0.0
        %894 = vmatpush1.msra.mxu0 0.0
        %895 = vmatprep.subr.mxu0 0.0
        %896 = vmatpush1.msra.mxu0 0.0
        %897 = vmatprep.subr.mxu0 0.0
        %898 = vmatpush1.msra.mxu0 0.0
        %899 = vmatprep.subr.mxu0 0.0
        %900 = vmatpush1.msra.mxu0 0.0
        %901 = vmatprep.subr.mxu0 0.0
        %902 = vmatpush1.msra.mxu0 0.0
        %903 = vmatprep.subr.mxu0 0.0
        %904 = vmatpush1.msra.mxu0 0.0
        %905 = vmatprep.subr.mxu0 0.0
        %906 = vmatpush1.msra.mxu0 0.0
        %907 = vmatprep.subr.mxu0 0.0
        %908 = vmatpush1.msra.mxu0 0.0
        %909 = vmatprep.subr.mxu0 0.0
        %910 = vmatpush1.msra.mxu0 0.0
        %911 = vmatprep.subr.mxu0 0.0
        %912 = vmatpush1.msra.mxu0 0.0
        %913 = vmatprep.subr.mxu0 0.0
        %914 = vmatpush1.msra.mxu0 0.0
        %915 = vmatprep.subr.mxu0 0.0
        %916 = vmatpush1.msra.mxu0 0.0
        %917 = vmatprep.subr.mxu0 0.0
        %918 = vmatpush1.msra.mxu0 0.0
        %919 = vmatprep.subr.mxu0 0.0
        %920 = vmatpush1.msra.mxu0 0.0
        %921 = vmatprep.subr.mxu0 0.0
        %922 = vmatpush1.msra.mxu0 0.0
        %923 = vmatprep.subr.mxu0 0.0
        %924 = vmatpush1.msra.mxu0 0.0
        %925 = vmatprep.subr.mxu0 0.0
        %926 = vmatpush1.msra.mxu0 0.0
        %927 = vmatprep.subr.mxu0 0.0
        %928 = vmatpush1.msra.mxu0 0.0
        %929 = vmatprep.subr.mxu0 0.0
        %930 = vmatpush1.msra.mxu0 0.0
        %931 = vmatprep.subr.mxu0 0.0
        %932 = vmatpush1.msra.mxu0 0.0
        %933 = vmatprep.subr.mxu0 0.0
        %934 = vmatpush1.msra.mxu0 0.0
        %935 = vmatprep.subr.mxu0 0.0
        %936 = vmatpush1.msra.mxu0 0.0
        %937 = vmatprep.subr.mxu0 0.0
        %938 = vmatpush1.msra.mxu0 0.0
        %939 = vmatprep.subr.mxu0 0.0
        %940 = vmatpush1.msra.mxu0 0.0
        %941 = vmatprep.subr.mxu0 0.0
        %942 = vmatpush1.msra.mxu0 0.0
        %943 = vmatprep.subr.mxu0 0.0
        %944 = vmatpush1.msra.mxu0 0.0
        %945 = vmatprep.subr.mxu0 0.0
        %946 = vmatpush1.msra.mxu0 0.0
        %947 = vmatprep.subr.mxu0 0.0
        %948 = vmatpush1.msra.mxu0 0.0
        %949 = vmatprep.subr.mxu0 0.0
        %950 = vmatpush1.msra.mxu0 0.0
        %951 = vmatprep.mubr.f32.mxu0 0.0
        %952 = vmatmul.mubr.f32.gmra.mrb[0].mxu0 %v885
        %v953 = vpop.f32.mrb[0].mxu0
        %v954 = vadd.f32 0.0, %v953
        %v955 = vpop.f32.mrb[0].mxu0
        %956 = vdwg.mxu0
        %958 = vrot.lane.b32.xlu0 %v954, 32
        %v959 = vpop.permute.xlu0 %958
        %vm961 = vcmask 523520
        %962 = vst.msk [vmem:[#allocation2] sm:$0xff] %vm961, %v959
        %963 = vrot.lane.b32.xlu0 %v432, 64
        %v964 = vpop.permute.xlu0 %963
        %965 = vrot.lane.b32.xlu0 %v515, 64
        %v966 = vpop.permute.xlu0 %965
        %967 = vrot.lane.b32.xlu0 %v521, 64
        %v968 = vpop.permute.xlu0 %967
        %v969 = vsel %vm357, %v964, 0
        %v971 = vsel %vm357, %v966, 0
        %v973 = vsel %vm357, %v968, 0
        %975 = vmatprep.subr.mxu0 0.0
        %976 = vmatpush1.xpose.msra.mxu0 %v971
        %977 = vmatprep.subr.mxu0 0.0
        %978 = vmatpush1.xpose.msra.mxu0 %v973
        %979 = vmatprep.subr.mxu0 0.0
        %980 = vmatpush1.xpose.msra.mxu0 0.0
        %981 = vmatprep.subr.mxu0 0.0
        %982 = vmatpush1.xpose.msra.mxu0 0.0
        %983 = vmatprep.subr.mxu0 0.0
        %984 = vmatpush1.xpose.msra.mxu0 0.0
        %985 = vmatprep.subr.mxu0 0.0
        %986 = vmatpush1.xpose.msra.mxu0 0.0
        %987 = vmatprep.subr.mxu0 0.0
        %988 = vmatpush1.xpose.msra.mxu0 0.0
        %989 = vmatprep.subr.mxu0 0.0
        %990 = vmatpush1.xpose.msra.mxu0 0.0
        %991 = vmatprep.subr.mxu0 0.0
        %992 = vmatpush1.xpose.msra.mxu0 0.0
        %993 = vmatprep.subr.mxu0 0.0
        %994 = vmatpush1.xpose.msra.mxu0 0.0
        %995 = vmatprep.subr.mxu0 0.0
        %996 = vmatpush1.xpose.msra.mxu0 0.0
        %997 = vmatprep.subr.mxu0 0.0
        %998 = vmatpush1.xpose.msra.mxu0 0.0
        %999 = vmatprep.subr.mxu0 0.0
        %1000 = vmatpush1.xpose.msra.mxu0 0.0
        %1001 = vmatprep.subr.mxu0 0.0
        %1002 = vmatpush1.xpose.msra.mxu0 0.0
        %1003 = vmatprep.subr.mxu0 0.0
        %1004 = vmatpush1.xpose.msra.mxu0 0.0
        %1005 = vmatprep.subr.mxu0 0.0
        %1006 = vmatpush1.xpose.msra.mxu0 0.0
        %1007 = vmatprep.subr.mxu0 0.0
        %1008 = vmatpush1.xpose.msra.mxu0 0.0
        %1009 = vmatprep.subr.mxu0 0.0
        %1010 = vmatpush1.xpose.msra.mxu0 0.0
        %1011 = vmatprep.subr.mxu0 0.0
        %1012 = vmatpush1.xpose.msra.mxu0 0.0
        %1013 = vmatprep.subr.mxu0 0.0
        %1014 = vmatpush1.xpose.msra.mxu0 0.0
        %1015 = vmatprep.subr.mxu0 0.0
        %1016 = vmatpush1.xpose.msra.mxu0 0.0
        %1017 = vmatprep.subr.mxu0 0.0
        %1018 = vmatpush1.xpose.msra.mxu0 0.0
        %1019 = vmatprep.subr.mxu0 0.0
        %1020 = vmatpush1.xpose.msra.mxu0 0.0
        %1021 = vmatprep.subr.mxu0 0.0
        %1022 = vmatpush1.xpose.msra.mxu0 0.0
        %1023 = vmatprep.subr.mxu0 0.0
        %1024 = vmatpush1.xpose.msra.mxu0 0.0
        %1025 = vmatprep.subr.mxu0 0.0
        %1026 = vmatpush1.xpose.msra.mxu0 0.0
        %1027 = vmatprep.subr.mxu0 0.0
        %1028 = vmatpush1.xpose.msra.mxu0 0.0
        %1029 = vmatprep.subr.mxu0 0.0
        %1030 = vmatpush1.xpose.msra.mxu0 0.0
        %1031 = vmatprep.subr.mxu0 0.0
        %1032 = vmatpush1.xpose.msra.mxu0 0.0
        %1033 = vmatprep.subr.mxu0 0.0
        %1034 = vmatpush1.xpose.msra.mxu0 0.0
        %1035 = vmatprep.subr.mxu0 0.0
        %1036 = vmatpush1.xpose.msra.mxu0 0.0
        %1037 = vmatprep.subr.mxu0 0.0
        %1038 = vmatpush1.xpose.msra.mxu0 0.0
        %1039 = vmatprep.mubr.f32.mxu0 0.0
        %1040 = vmatmul.mubr.f32.gmra.mrb[0].mxu0 %v969
        %v1041 = vpop.f32.mrb[0].mxu0
        %v1042 = vadd.f32 %v616, %v1041
        %v1043 = vpop.f32.mrb[0].mxu0
        %1044 = vdwg.mxu0
        %v1045 = vsel %vm697, %v1042, -inf
        %1046 = vmax.xlane.f32.xlu0 %v1045
        %v1047 = vpop.xlane.xlu0 %1046
        %v1048 = vsub.f32 %v1042, %v1047
        %v1049 = vmul.f32 %v1048, 1.442695
        %v1050 = vpow.pop %v1049
        %v1051 = vsel %vm697, %v1050, 0.0
        %1052 = vadd.xlane.f32.xlu0 %v1051
        %v1053 = vpop.xlane.xlu0 %1052
        %v1054 = vrcp.pop %v1053
        %v1055 = vmul.f32 %v1050, %v1054
        %1056 = vrot.lane.b32.xlu0 %v600, 64
        %v1057 = vpop.permute.xlu0 %1056
        %1058 = vrot.lane.b32.xlu0 %v606, 64
        %v1059 = vpop.permute.xlu0 %1058
        %v1063 = vsel %vm697, %v1055, 0
        %1065 = vmatprep.subr.mxu0 0.0
        %1066 = vmatpush1.msra.mxu0 %v1057
        %1067 = vmatprep.subr.mxu0 0.0
        %1068 = vmatpush1.msra.mxu0 %v1059
        %1069 = vmatprep.subr.mxu0 0.0
        %1070 = vmatpush1.msra.mxu0 0.0
        %1071 = vmatprep.subr.mxu0 0.0
        %1072 = vmatpush1.msra.mxu0 0.0
        %1073 = vmatprep.subr.mxu0 0.0
        %1074 = vmatpush1.msra.mxu0 0.0
        %1075 = vmatprep.subr.mxu0 0.0
        %1076 = vmatpush1.msra.mxu0 0.0
        %1077 = vmatprep.subr.mxu0 0.0
        %1078 = vmatpush1.msra.mxu0 0.0
        %1079 = vmatprep.subr.mxu0 0.0
        %1080 = vmatpush1.msra.mxu0 0.0
        %1081 = vmatprep.subr.mxu0 0.0
        %1082 = vmatpush1.msra.mxu0 0.0
        %1083 = vmatprep.subr.mxu0 0.0
        %1084 = vmatpush1.msra.mxu0 0.0
        %1085 = vmatprep.subr.mxu0 0.0
        %1086 = vmatpush1.msra.mxu0 0.0
        %1087 = vmatprep.subr.mxu0 0.0
        %1088 = vmatpush1.msra.mxu0 0.0
        %1089 = vmatprep.subr.mxu0 0.0
        %1090 = vmatpush1.msra.mxu0 0.0
        %1091 = vmatprep.subr.mxu0 0.0
        %1092 = vmatpush1.msra.mxu0 0.0
        %1093 = vmatprep.subr.mxu0 0.0
        %1094 = vmatpush1.msra.mxu0 0.0
        %1095 = vmatprep.subr.mxu0 0.0
        %1096 = vmatpush1.msra.mxu0 0.0
        %1097 = vmatprep.subr.mxu0 0.0
        %1098 = vmatpush1.msra.mxu0 0.0
        %1099 = vmatprep.subr.mxu0 0.0
        %1100 = vmatpush1.msra.mxu0 0.0
        %1101 = vmatprep.subr.mxu0 0.0
        %1102 = vmatpush1.msra.mxu0 0.0
        %1103 = vmatprep.subr.mxu0 0.0
        %1104 = vmatpush1.msra.mxu0 0.0
        %1105 = vmatprep.subr.mxu0 0.0
        %1106 = vmatpush1.msra.mxu0 0.0
        %1107 = vmatprep.subr.mxu0 0.0
        %1108 = vmatpush1.msra.mxu0 0.0
        %1109 = vmatprep.subr.mxu0 0.0
        %1110 = vmatpush1.msra.mxu0 0.0
        %1111 = vmatprep.subr.mxu0 0.0
        %1112 = vmatpush1.msra.mxu0 0.0
        %1113 = vmatprep.subr.mxu0 0.0
        %1114 = vmatpush1.msra.mxu0 0.0
        %1115 = vmatprep.subr.mxu0 0.0
        %1116 = vmatpush1.msra.mxu0 0.0
        %1117 = vmatprep.subr.mxu0 0.0
        %1118 = vmatpush1.msra.mxu0 0.0
        %1119 = vmatprep.subr.mxu0 0.0
        %1120 = vmatpush1.msra.mxu0 0.0
        %1121 = vmatprep.subr.mxu0 0.0
        %1122 = vmatpush1.msra.mxu0 0.0
        %1123 = vmatprep.subr.mxu0 0.0
        %1124 = vmatpush1.msra.mxu0 0.0
        %1125 = vmatprep.subr.mxu0 0.0
        %1126 = vmatpush1.msra.mxu0 0.0
        %1127 = vmatprep.subr.mxu0 0.0
        %1128 = vmatpush1.msra.mxu0 0.0
        %1129 = vmatprep.mubr.f32.mxu0 0.0
        %1130 = vmatmul.mubr.f32.gmra.mrb[0].mxu0 %v1063
        %v1131 = vpop.f32.mrb[0].mxu0
        %v1132 = vadd.f32 0.0, %v1131
        %v1133 = vpop.f32.mrb[0].mxu0
        %1134 = vdwg.mxu0
        %1136 = vrot.lane.b32.xlu0 %v1132, 64
        %v1137 = vpop.permute.xlu0 %1136
        %vm1139 = vcmask 785920
        %1140 = vst.msk [vmem:[#allocation2] sm:$0xff] %vm1139, %v1137
        %1141 = vrot.lane.b32.xlu0 %v432, 32
        %v1142 = vpop.permute.xlu0 %1141
        %1143 = vrot.lane.b32.xlu0 %v515, 32
        %v1144 = vpop.permute.xlu0 %1143
        %1145 = vrot.lane.b32.xlu0 %v521, 32
        %v1146 = vpop.permute.xlu0 %1145
        %v1147 = vsel %vm357, %v1142, 0
        %v1149 = vsel %vm357, %v1144, 0
        %v1151 = vsel %vm357, %v1146, 0
        %1153 = vmatprep.subr.mxu0 0.0
        %1154 = vmatpush1.xpose.msra.mxu0 %v1149
        %1155 = vmatprep.subr.mxu0 0.0
        %1156 = vmatpush1.xpose.msra.mxu0 %v1151
        %1157 = vmatprep.subr.mxu0 0.0
        %1158 = vmatpush1.xpose.msra.mxu0 0.0
        %1159 = vmatprep.subr.mxu0 0.0
        %1160 = vmatpush1.xpose.msra.mxu0 0.0
        %1161 = vmatprep.subr.mxu0 0.0
        %1162 = vmatpush1.xpose.msra.mxu0 0.0
        %1163 = vmatprep.subr.mxu0 0.0
        %1164 = vmatpush1.xpose.msra.mxu0 0.0
        %1165 = vmatprep.subr.mxu0 0.0
        %1166 = vmatpush1.xpose.msra.mxu0 0.0
        %1167 = vmatprep.subr.mxu0 0.0
        %1168 = vmatpush1.xpose.msra.mxu0 0.0
        %1169 = vmatprep.subr.mxu0 0.0
        %1170 = vmatpush1.xpose.msra.mxu0 0.0
        %1171 = vmatprep.subr.mxu0 0.0
        %1172 = vmatpush1.xpose.msra.mxu0 0.0
        %1173 = vmatprep.subr.mxu0 0.0
        %1174 = vmatpush1.xpose.msra.mxu0 0.0
        %1175 = vmatprep.subr.mxu0 0.0
        %1176 = vmatpush1.xpose.msra.mxu0 0.0
        %1177 = vmatprep.subr.mxu0 0.0
        %1178 = vmatpush1.xpose.msra.mxu0 0.0
        %1179 = vmatprep.subr.mxu0 0.0
        %1180 = vmatpush1.xpose.msra.mxu0 0.0
        %1181 = vmatprep.subr.mxu0 0.0
        %1182 = vmatpush1.xpose.msra.mxu0 0.0
        %1183 = vmatprep.subr.mxu0 0.0
        %1184 = vmatpush1.xpose.msra.mxu0 0.0
        %1185 = vmatprep.subr.mxu0 0.0
        %1186 = vmatpush1.xpose.msra.mxu0 0.0
        %1187 = vmatprep.subr.mxu0 0.0
        %1188 = vmatpush1.xpose.msra.mxu0 0.0
        %1189 = vmatprep.subr.mxu0 0.0
        %1190 = vmatpush1.xpose.msra.mxu0 0.0
        %1191 = vmatprep.subr.mxu0 0.0
        %1192 = vmatpush1.xpose.msra.mxu0 0.0
        %1193 = vmatprep.subr.mxu0 0.0
        %1194 = vmatpush1.xpose.msra.mxu0 0.0
        %1195 = vmatprep.subr.mxu0 0.0
        %1196 = vmatpush1.xpose.msra.mxu0 0.0
        %1197 = vmatprep.subr.mxu0 0.0
        %1198 = vmatpush1.xpose.msra.mxu0 0.0
        %1199 = vmatprep.subr.mxu0 0.0
        %1200 = vmatpush1.xpose.msra.mxu0 0.0
        %1201 = vmatprep.subr.mxu0 0.0
        %1202 = vmatpush1.xpose.msra.mxu0 0.0
        %1203 = vmatprep.subr.mxu0 0.0
        %1204 = vmatpush1.xpose.msra.mxu0 0.0
        %1205 = vmatprep.subr.mxu0 0.0
        %1206 = vmatpush1.xpose.msra.mxu0 0.0
        %1207 = vmatprep.subr.mxu0 0.0
        %1208 = vmatpush1.xpose.msra.mxu0 0.0
        %1209 = vmatprep.subr.mxu0 0.0
        %1210 = vmatpush1.xpose.msra.mxu0 0.0
        %1211 = vmatprep.subr.mxu0 0.0
        %1212 = vmatpush1.xpose.msra.mxu0 0.0
        %1213 = vmatprep.subr.mxu0 0.0
        %1214 = vmatpush1.xpose.msra.mxu0 0.0
        %1215 = vmatprep.subr.mxu0 0.0
        %1216 = vmatpush1.xpose.msra.mxu0 0.0
        %1217 = vmatprep.mubr.f32.mxu0 0.0
        %1218 = vmatmul.mubr.f32.gmra.mrb[0].mxu0 %v1147
        %v1219 = vpop.f32.mrb[0].mxu0
        %v1220 = vadd.f32 %v616, %v1219
        %v1221 = vpop.f32.mrb[0].mxu0
        %1222 = vdwg.mxu0
        %v1223 = vsel %vm697, %v1220, -inf
        %1224 = vmax.xlane.f32.xlu0 %v1223
        %v1225 = vpop.xlane.xlu0 %1224
        %v1226 = vsub.f32 %v1220, %v1225
        %v1227 = vmul.f32 %v1226, 1.442695
        %v1228 = vpow.pop %v1227
        %v1229 = vsel %vm697, %v1228, 0.0
        %1230 = vadd.xlane.f32.xlu0 %v1229
        %v1231 = vpop.xlane.xlu0 %1230
        %v1232 = vrcp.pop %v1231
        %v1233 = vmul.f32 %v1228, %v1232
        %1234 = vrot.lane.b32.xlu0 %v600, 32
        %v1235 = vpop.permute.xlu0 %1234
        %1236 = vrot.lane.b32.xlu0 %v606, 32
        %v1237 = vpop.permute.xlu0 %1236
        %v1241 = vsel %vm697, %v1233, 0
        %1243 = vmatprep.subr.mxu0 0.0
        %1244 = vmatpush1.msra.mxu0 %v1235
        %1245 = vmatprep.subr.mxu0 0.0
        %1246 = vmatpush1.msra.mxu0 %v1237
        %1247 = vmatprep.subr.mxu0 0.0
        %1248 = vmatpush1.msra.mxu0 0.0
        %1249 = vmatprep.subr.mxu0 0.0
        %1250 = vmatpush1.msra.mxu0 0.0
        %1251 = vmatprep.subr.mxu0 0.0
        %1252 = vmatpush1.msra.mxu0 0.0
        %1253 = vmatprep.subr.mxu0 0.0
        %1254 = vmatpush1.msra.mxu0 0.0
        %1255 = vmatprep.subr.mxu0 0.0
        %1256 = vmatpush1.msra.mxu0 0.0
        %1257 = vmatprep.subr.mxu0 0.0
        %1258 = vmatpush1.msra.mxu0 0.0
        %1259 = vmatprep.subr.mxu0 0.0
        %1260 = vmatpush1.msra.mxu0 0.0
        %1261 = vmatprep.subr.mxu0 0.0
        %1262 = vmatpush1.msra.mxu0 0.0
        %1263 = vmatprep.subr.mxu0 0.0
        %1264 = vmatpush1.msra.mxu0 0.0
        %1265 = vmatprep.subr.mxu0 0.0
        %1266 = vmatpush1.msra.mxu0 0.0
        %1267 = vmatprep.subr.mxu0 0.0
        %1268 = vmatpush1.msra.mxu0 0.0
        %1269 = vmatprep.subr.mxu0 0.0
        %1270 = vmatpush1.msra.mxu0 0.0
        %1271 = vmatprep.subr.mxu0 0.0
        %1272 = vmatpush1.msra.mxu0 0.0
        %1273 = vmatprep.subr.mxu0 0.0
        %1274 = vmatpush1.msra.mxu0 0.0
        %1275 = vmatprep.subr.mxu0 0.0
        %1276 = vmatpush1.msra.mxu0 0.0
        %1277 = vmatprep.subr.mxu0 0.0
        %1278 = vmatpush1.msra.mxu0 0.0
        %1279 = vmatprep.subr.mxu0 0.0
        %1280 = vmatpush1.msra.mxu0 0.0
        %1281 = vmatprep.subr.mxu0 0.0
        %1282 = vmatpush1.msra.mxu0 0.0
        %1283 = vmatprep.subr.mxu0 0.0
        %1284 = vmatpush1.msra.mxu0 0.0
        %1285 = vmatprep.subr.mxu0 0.0
        %1286 = vmatpush1.msra.mxu0 0.0
        %1287 = vmatprep.subr.mxu0 0.0
        %1288 = vmatpush1.msra.mxu0 0.0
        %1289 = vmatprep.subr.mxu0 0.0
        %1290 = vmatpush1.msra.mxu0 0.0
        %1291 = vmatprep.subr.mxu0 0.0
        %1292 = vmatpush1.msra.mxu0 0.0
        %1293 = vmatprep.subr.mxu0 0.0
        %1294 = vmatpush1.msra.mxu0 0.0
        %1295 = vmatprep.subr.mxu0 0.0
        %1296 = vmatpush1.msra.mxu0 0.0
        %1297 = vmatprep.subr.mxu0 0.0
        %1298 = vmatpush1.msra.mxu0 0.0
        %1299 = vmatprep.subr.mxu0 0.0
        %1300 = vmatpush1.msra.mxu0 0.0
        %1301 = vmatprep.subr.mxu0 0.0
        %1302 = vmatpush1.msra.mxu0 0.0
        %1303 = vmatprep.subr.mxu0 0.0
        %1304 = vmatpush1.msra.mxu0 0.0
        %1305 = vmatprep.subr.mxu0 0.0
        %1306 = vmatpush1.msra.mxu0 0.0
        %1307 = vmatprep.mubr.f32.mxu0 0.0
        %1308 = vmatmul.mubr.f32.gmra.mrb[0].mxu0 %v1241
        %v1309 = vpop.f32.mrb[0].mxu0
        %v1310 = vadd.f32 0.0, %v1309
        %v1311 = vpop.f32.mrb[0].mxu0
        %1312 = vdwg.mxu0
        %1314 = vrot.lane.b32.xlu0 %v1310, 96
        %v1315 = vpop.permute.xlu0 %1314
        %vm1317 = vcmask 1048320
        %1318 = vst.msk [vmem:[#allocation2] sm:$0xff] %vm1317, %v1315
        %v1320 = vsel %vm357, %v433, 0
        %v1323 = vsel %vm357, %v517, 0
        %v1326 = vsel %vm357, %v523, 0
        %1328 = vmatprep.subr.mxu0 0.0
        %1329 = vmatpush1.xpose.msra.mxu0 %v1323
        %1330 = vmatprep.subr.mxu0 0.0
        %1331 = vmatpush1.xpose.msra.mxu0 %v1326
        %1332 = vmatprep.subr.mxu0 0.0
        %1333 = vmatpush1.xpose.msra.mxu0 0.0
        %1334 = vmatprep.subr.mxu0 0.0
        %1335 = vmatpush1.xpose.msra.mxu0 0.0
        %1336 = vmatprep.subr.mxu0 0.0
        %1337 = vmatpush1.xpose.msra.mxu0 0.0
        %1338 = vmatprep.subr.mxu0 0.0
        %1339 = vmatpush1.xpose.msra.mxu0 0.0
        %1340 = vmatprep.subr.mxu0 0.0
        %1341 = vmatpush1.xpose.msra.mxu0 0.0
        %1342 = vmatprep.subr.mxu0 0.0
        %1343 = vmatpush1.xpose.msra.mxu0 0.0
        %1344 = vmatprep.subr.mxu0 0.0
        %1345 = vmatpush1.xpose.msra.mxu0 0.0
        %1346 = vmatprep.subr.mxu0 0.0
        %1347 = vmatpush1.xpose.msra.mxu0 0.0
        %1348 = vmatprep.subr.mxu0 0.0
        %1349 = vmatpush1.xpose.msra.mxu0 0.0
        %1350 = vmatprep.subr.mxu0 0.0
        %1351 = vmatpush1.xpose.msra.mxu0 0.0
        %1352 = vmatprep.subr.mxu0 0.0
        %1353 = vmatpush1.xpose.msra.mxu0 0.0
        %1354 = vmatprep.subr.mxu0 0.0
        %1355 = vmatpush1.xpose.msra.mxu0 0.0
        %1356 = vmatprep.subr.mxu0 0.0
        %1357 = vmatpush1.xpose.msra.mxu0 0.0
        %1358 = vmatprep.subr.mxu0 0.0
        %1359 = vmatpush1.xpose.msra.mxu0 0.0
        %1360 = vmatprep.subr.mxu0 0.0
        %1361 = vmatpush1.xpose.msra.mxu0 0.0
        %1362 = vmatprep.subr.mxu0 0.0
        %1363 = vmatpush1.xpose.msra.mxu0 0.0
        %1364 = vmatprep.subr.mxu0 0.0
        %1365 = vmatpush1.xpose.msra.mxu0 0.0
        %1366 = vmatprep.subr.mxu0 0.0
        %1367 = vmatpush1.xpose.msra.mxu0 0.0
        %1368 = vmatprep.subr.mxu0 0.0
        %1369 = vmatpush1.xpose.msra.mxu0 0.0
        %1370 = vmatprep.subr.mxu0 0.0
        %1371 = vmatpush1.xpose.msra.mxu0 0.0
        %1372 = vmatprep.subr.mxu0 0.0
        %1373 = vmatpush1.xpose.msra.mxu0 0.0
        %1374 = vmatprep.subr.mxu0 0.0
        %1375 = vmatpush1.xpose.msra.mxu0 0.0
        %1376 = vmatprep.subr.mxu0 0.0
        %1377 = vmatpush1.xpose.msra.mxu0 0.0
        %1378 = vmatprep.subr.mxu0 0.0
        %1379 = vmatpush1.xpose.msra.mxu0 0.0
        %1380 = vmatprep.subr.mxu0 0.0
        %1381 = vmatpush1.xpose.msra.mxu0 0.0
        %1382 = vmatprep.subr.mxu0 0.0
        %1383 = vmatpush1.xpose.msra.mxu0 0.0
        %1384 = vmatprep.subr.mxu0 0.0
        %1385 = vmatpush1.xpose.msra.mxu0 0.0
        %1386 = vmatprep.subr.mxu0 0.0
        %1387 = vmatpush1.xpose.msra.mxu0 0.0
        %1388 = vmatprep.subr.mxu0 0.0
        %1389 = vmatpush1.xpose.msra.mxu0 0.0
        %1390 = vmatprep.subr.mxu0 0.0
        %1391 = vmatpush1.xpose.msra.mxu0 0.0
        %1392 = vmatprep.mubr.f32.mxu0 0.0
        %1393 = vmatmul.mubr.f32.gmra.mrb[0].mxu0 %v1320
        %v1394 = vpop.f32.mrb[0].mxu0
        %v1395 = vadd.f32 %v616, %v1394
        %v1396 = vpop.f32.mrb[0].mxu0
        %1397 = vdwg.mxu0
        %v1398 = vsel %vm697, %v1395, -inf
        %1399 = vmax.xlane.f32.xlu0 %v1398
        %v1400 = vpop.xlane.xlu0 %1399
        %v1401 = vsub.f32 %v1395, %v1400
        %v1402 = vmul.f32 %v1401, 1.442695
        %v1403 = vpow.pop %v1402
        %v1404 = vsel %vm697, %v1403, 0.0
        %1405 = vadd.xlane.f32.xlu0 %v1404
        %v1406 = vpop.xlane.xlu0 %1405
        %v1407 = vrcp.pop %v1406
        %v1408 = vmul.f32 %v1403, %v1407
        %v1410 = vsel %vm697, %v1408, 0
        %1412 = vmatprep.subr.mxu0 0.0
        %1413 = vmatpush1.msra.mxu0 %v602
        %1414 = vmatprep.subr.mxu0 0.0
        %1415 = vmatpush1.msra.mxu0 %v608
        %1416 = vmatprep.subr.mxu0 0.0
        %1417 = vmatpush1.msra.mxu0 0.0
        %1418 = vmatprep.subr.mxu0 0.0
        %1419 = vmatpush1.msra.mxu0 0.0
        %1420 = vmatprep.subr.mxu0 0.0
        %1421 = vmatpush1.msra.mxu0 0.0
        %1422 = vmatprep.subr.mxu0 0.0
        %1423 = vmatpush1.msra.mxu0 0.0
        %1424 = vmatprep.subr.mxu0 0.0
        %1425 = vmatpush1.msra.mxu0 0.0
        %1426 = vmatprep.subr.mxu0 0.0
        %1427 = vmatpush1.msra.mxu0 0.0
        %1428 = vmatprep.subr.mxu0 0.0
        %1429 = vmatpush1.msra.mxu0 0.0
        %1430 = vmatprep.subr.mxu0 0.0
        %1431 = vmatpush1.msra.mxu0 0.0
        %1432 = vmatprep.subr.mxu0 0.0
        %1433 = vmatpush1.msra.mxu0 0.0
        %1434 = vmatprep.subr.mxu0 0.0
        %1435 = vmatpush1.msra.mxu0 0.0
        %1436 = vmatprep.subr.mxu0 0.0
        %1437 = vmatpush1.msra.mxu0 0.0
        %1438 = vmatprep.subr.mxu0 0.0
        %1439 = vmatpush1.msra.mxu0 0.0
        %1440 = vmatprep.subr.mxu0 0.0
        %1441 = vmatpush1.msra.mxu0 0.0
        %1442 = vmatprep.subr.mxu0 0.0
        %1443 = vmatpush1.msra.mxu0 0.0
        %1444 = vmatprep.subr.mxu0 0.0
        %1445 = vmatpush1.msra.mxu0 0.0
        %1446 = vmatprep.subr.mxu0 0.0
        %1447 = vmatpush1.msra.mxu0 0.0
        %1448 = vmatprep.subr.mxu0 0.0
        %1449 = vmatpush1.msra.mxu0 0.0
        %1450 = vmatprep.subr.mxu0 0.0
        %1451 = vmatpush1.msra.mxu0 0.0
        %1452 = vmatprep.subr.mxu0 0.0
        %1453 = vmatpush1.msra.mxu0 0.0
        %1454 = vmatprep.subr.mxu0 0.0
        %1455 = vmatpush1.msra.mxu0 0.0
        %1456 = vmatprep.subr.mxu0 0.0
        %1457 = vmatpush1.msra.mxu0 0.0
        %1458 = vmatprep.subr.mxu0 0.0
        %1459 = vmatpush1.msra.mxu0 0.0
        %1460 = vmatprep.subr.mxu0 0.0
        %1461 = vmatpush1.msra.mxu0 0.0
        %1462 = vmatprep.subr.mxu0 0.0
        %1463 = vmatpush1.msra.mxu0 0.0
        %1464 = vmatprep.subr.mxu0 0.0
        %1465 = vmatpush1.msra.mxu0 0.0
        %1466 = vmatprep.subr.mxu0 0.0
        %1467 = vmatpush1.msra.mxu0 0.0
        %1468 = vmatprep.subr.mxu0 0.0
        %1469 = vmatpush1.msra.mxu0 0.0
        %1470 = vmatprep.subr.mxu0 0.0
        %1471 = vmatpush1.msra.mxu0 0.0
        %1472 = vmatprep.subr.mxu0 0.0
        %1473 = vmatpush1.msra.mxu0 0.0
        %1474 = vmatprep.subr.mxu0 0.0
        %1475 = vmatpush1.msra.mxu0 0.0
        %1476 = vmatprep.mubr.f32.mxu0 0.0
        %1477 = vmatmul.mubr.f32.gmra.mrb[0].mxu0 %v1410
        %v1478 = vpop.f32.mrb[0].mxu0
        %v1479 = vadd.f32 0.0, %v1478
        %v1480 = vpop.f32.mrb[0].mxu0
        %1481 = vdwg.mxu0
        %1482 = vst.msk [vmem:[#allocation2 + $0x8] sm:$0xff] %vm357, %v1479
        %1483 = vrot.lane.b32.xlu0 %v433, 96
        %v1484 = vpop.permute.xlu0 %1483
        %1485 = vrot.lane.b32.xlu0 %v517, 96
        %v1486 = vpop.permute.xlu0 %1485
        %1487 = vrot.lane.b32.xlu0 %v523, 96
        %v1488 = vpop.permute.xlu0 %1487
        %v1489 = vsel %vm357, %v1484, 0
        %v1491 = vsel %vm357, %v1486, 0
        %v1493 = vsel %vm357, %v1488, 0
        %1495 = vmatprep.subr.mxu0 0.0
        %1496 = vmatpush1.xpose.msra.mxu0 %v1491
        %1497 = vmatprep.subr.mxu0 0.0
        %1498 = vmatpush1.xpose.msra.mxu0 %v1493
        %1499 = vmatprep.subr.mxu0 0.0
        %1500 = vmatpush1.xpose.msra.mxu0 0.0
        %1501 = vmatprep.subr.mxu0 0.0
        %1502 = vmatpush1.xpose.msra.mxu0 0.0
        %1503 = vmatprep.subr.mxu0 0.0
        %1504 = vmatpush1.xpose.msra.mxu0 0.0
        %1505 = vmatprep.subr.mxu0 0.0
        %1506 = vmatpush1.xpose.msra.mxu0 0.0
        %1507 = vmatprep.subr.mxu0 0.0
        %1508 = vmatpush1.xpose.msra.mxu0 0.0
        %1509 = vmatprep.subr.mxu0 0.0
        %1510 = vmatpush1.xpose.msra.mxu0 0.0
        %1511 = vmatprep.subr.mxu0 0.0
        %1512 = vmatpush1.xpose.msra.mxu0 0.0
        %1513 = vmatprep.subr.mxu0 0.0
        %1514 = vmatpush1.xpose.msra.mxu0 0.0
        %1515 = vmatprep.subr.mxu0 0.0
        %1516 = vmatpush1.xpose.msra.mxu0 0.0
        %1517 = vmatprep.subr.mxu0 0.0
        %1518 = vmatpush1.xpose.msra.mxu0 0.0
        %1519 = vmatprep.subr.mxu0 0.0
        %1520 = vmatpush1.xpose.msra.mxu0 0.0
        %1521 = vmatprep.subr.mxu0 0.0
        %1522 = vmatpush1.xpose.msra.mxu0 0.0
        %1523 = vmatprep.subr.mxu0 0.0
        %1524 = vmatpush1.xpose.msra.mxu0 0.0
        %1525 = vmatprep.subr.mxu0 0.0
        %1526 = vmatpush1.xpose.msra.mxu0 0.0
        %1527 = vmatprep.subr.mxu0 0.0
        %1528 = vmatpush1.xpose.msra.mxu0 0.0
        %1529 = vmatprep.subr.mxu0 0.0
        %1530 = vmatpush1.xpose.msra.mxu0 0.0
        %1531 = vmatprep.subr.mxu0 0.0
        %1532 = vmatpush1.xpose.msra.mxu0 0.0
        %1533 = vmatprep.subr.mxu0 0.0
        %1534 = vmatpush1.xpose.msra.mxu0 0.0
        %1535 = vmatprep.subr.mxu0 0.0
        %1536 = vmatpush1.xpose.msra.mxu0 0.0
        %1537 = vmatprep.subr.mxu0 0.0
        %1538 = vmatpush1.xpose.msra.mxu0 0.0
        %1539 = vmatprep.subr.mxu0 0.0
        %1540 = vmatpush1.xpose.msra.mxu0 0.0
        %1541 = vmatprep.subr.mxu0 0.0
        %1542 = vmatpush1.xpose.msra.mxu0 0.0
        %1543 = vmatprep.subr.mxu0 0.0
        %1544 = vmatpush1.xpose.msra.mxu0 0.0
        %1545 = vmatprep.subr.mxu0 0.0
        %1546 = vmatpush1.xpose.msra.mxu0 0.0
        %1547 = vmatprep.subr.mxu0 0.0
        %1548 = vmatpush1.xpose.msra.mxu0 0.0
        %1549 = vmatprep.subr.mxu0 0.0
        %1550 = vmatpush1.xpose.msra.mxu0 0.0
        %1551 = vmatprep.subr.mxu0 0.0
        %1552 = vmatpush1.xpose.msra.mxu0 0.0
        %1553 = vmatprep.subr.mxu0 0.0
        %1554 = vmatpush1.xpose.msra.mxu0 0.0
        %1555 = vmatprep.subr.mxu0 0.0
        %1556 = vmatpush1.xpose.msra.mxu0 0.0
        %1557 = vmatprep.subr.mxu0 0.0
        %1558 = vmatpush1.xpose.msra.mxu0 0.0
        %1559 = vmatprep.mubr.f32.mxu0 0.0
        %1560 = vmatmul.mubr.f32.gmra.mrb[0].mxu0 %v1489
        %v1561 = vpop.f32.mrb[0].mxu0
        %v1562 = vadd.f32 %v616, %v1561
        %v1563 = vpop.f32.mrb[0].mxu0
        %1564 = vdwg.mxu0
        %v1565 = vsel %vm697, %v1562, -inf
        %1566 = vmax.xlane.f32.xlu0 %v1565
        %v1567 = vpop.xlane.xlu0 %1566
        %v1568 = vsub.f32 %v1562, %v1567
        %v1569 = vmul.f32 %v1568, 1.442695
        %v1570 = vpow.pop %v1569
        %v1571 = vsel %vm697, %v1570, 0.0
        %1572 = vadd.xlane.f32.xlu0 %v1571
        %v1573 = vpop.xlane.xlu0 %1572
        %v1574 = vrcp.pop %v1573
        %v1575 = vmul.f32 %v1570, %v1574
        %1578 = vrot.lane.b32.xlu0 %v602, 96
        %v1579 = vpop.permute.xlu0 %1578
        %1580 = vrot.lane.b32.xlu0 %v608, 96
        %v1581 = vpop.permute.xlu0 %1580
        %v1585 = vsel %vm697, %v1575, 0
        %1587 = vmatprep.subr.mxu0 0.0
        %1588 = vmatpush1.msra.mxu0 %v1579
        %1589 = vmatprep.subr.mxu0 0.0
        %1590 = vmatpush1.msra.mxu0 %v1581
        %1591 = vmatprep.subr.mxu0 0.0
        %1592 = vmatpush1.msra.mxu0 0.0
        %1593 = vmatprep.subr.mxu0 0.0
        %1594 = vmatpush1.msra.mxu0 0.0
        %1595 = vmatprep.subr.mxu0 0.0
        %1596 = vmatpush1.msra.mxu0 0.0
        %1597 = vmatprep.subr.mxu0 0.0
        %1598 = vmatpush1.msra.mxu0 0.0
        %1599 = vmatprep.subr.mxu0 0.0
        %1600 = vmatpush1.msra.mxu0 0.0
        %1601 = vmatprep.subr.mxu0 0.0
        %1602 = vmatpush1.msra.mxu0 0.0
        %1603 = vmatprep.subr.mxu0 0.0
        %1604 = vmatpush1.msra.mxu0 0.0
        %1605 = vmatprep.subr.mxu0 0.0
        %1606 = vmatpush1.msra.mxu0 0.0
        %1607 = vmatprep.subr.mxu0 0.0
        %1608 = vmatpush1.msra.mxu0 0.0
        %1609 = vmatprep.subr.mxu0 0.0
        %1610 = vmatpush1.msra.mxu0 0.0
        %1611 = vmatprep.subr.mxu0 0.0
        %1612 = vmatpush1.msra.mxu0 0.0
        %1613 = vmatprep.subr.mxu0 0.0
        %1614 = vmatpush1.msra.mxu0 0.0
        %1615 = vmatprep.subr.mxu0 0.0
        %1616 = vmatpush1.msra.mxu0 0.0
        %1617 = vmatprep.subr.mxu0 0.0
        %1618 = vmatpush1.msra.mxu0 0.0
        %1619 = vmatprep.subr.mxu0 0.0
        %1620 = vmatpush1.msra.mxu0 0.0
        %1621 = vmatprep.subr.mxu0 0.0
        %1622 = vmatpush1.msra.mxu0 0.0
        %1623 = vmatprep.subr.mxu0 0.0
        %1624 = vmatpush1.msra.mxu0 0.0
        %1625 = vmatprep.subr.mxu0 0.0
        %1626 = vmatpush1.msra.mxu0 0.0
        %1627 = vmatprep.subr.mxu0 0.0
        %1628 = vmatpush1.msra.mxu0 0.0
        %1629 = vmatprep.subr.mxu0 0.0
        %1630 = vmatpush1.msra.mxu0 0.0
        %1631 = vmatprep.subr.mxu0 0.0
        %1632 = vmatpush1.msra.mxu0 0.0
        %1633 = vmatprep.subr.mxu0 0.0
        %1634 = vmatpush1.msra.mxu0 0.0
        %1635 = vmatprep.subr.mxu0 0.0
        %1636 = vmatpush1.msra.mxu0 0.0
        %1637 = vmatprep.subr.mxu0 0.0
        %1638 = vmatpush1.msra.mxu0 0.0
        %1639 = vmatprep.subr.mxu0 0.0
        %1640 = vmatpush1.msra.mxu0 0.0
        %1641 = vmatprep.subr.mxu0 0.0
        %1642 = vmatpush1.msra.mxu0 0.0
        %1643 = vmatprep.subr.mxu0 0.0
        %1644 = vmatpush1.msra.mxu0 0.0
        %1645 = vmatprep.subr.mxu0 0.0
        %1646 = vmatpush1.msra.mxu0 0.0
        %1647 = vmatprep.subr.mxu0 0.0
        %1648 = vmatpush1.msra.mxu0 0.0
        %1649 = vmatprep.subr.mxu0 0.0
        %1650 = vmatpush1.msra.mxu0 0.0
        %1651 = vmatprep.mubr.f32.mxu0 0.0
        %1652 = vmatmul.mubr.f32.gmra.mrb[0].mxu0 %v1585
        %v1653 = vpop.f32.mrb[0].mxu0
        %v1654 = vadd.f32 0.0, %v1653
        %v1655 = vpop.f32.mrb[0].mxu0
        %1656 = vdwg.mxu0
        %1658 = vrot.lane.b32.xlu0 %v1654, 32
        %v1659 = vpop.permute.xlu0 %1658
        %1661 = vst.msk [vmem:[#allocation2 + $0x8] sm:$0xff] %vm961, %v1659
        %1662 = vrot.lane.b32.xlu0 %v433, 64
        %v1663 = vpop.permute.xlu0 %1662
        %1664 = vrot.lane.b32.xlu0 %v517, 64
        %v1665 = vpop.permute.xlu0 %1664
        %1666 = vrot.lane.b32.xlu0 %v523, 64
        %v1667 = vpop.permute.xlu0 %1666
        %v1668 = vsel %vm357, %v1663, 0
        %v1670 = vsel %vm357, %v1665, 0
        %v1672 = vsel %vm357, %v1667, 0
        %1674 = vmatprep.subr.mxu0 0.0
        %1675 = vmatpush1.xpose.msra.mxu0 %v1670
        %1676 = vmatprep.subr.mxu0 0.0
        %1677 = vmatpush1.xpose.msra.mxu0 %v1672
        %1678 = vmatprep.subr.mxu0 0.0
        %1679 = vmatpush1.xpose.msra.mxu0 0.0
        %1680 = vmatprep.subr.mxu0 0.0
        %1681 = vmatpush1.xpose.msra.mxu0 0.0
        %1682 = vmatprep.subr.mxu0 0.0
        %1683 = vmatpush1.xpose.msra.mxu0 0.0
        %1684 = vmatprep.subr.mxu0 0.0
        %1685 = vmatpush1.xpose.msra.mxu0 0.0
        %1686 = vmatprep.subr.mxu0 0.0
        %1687 = vmatpush1.xpose.msra.mxu0 0.0
        %1688 = vmatprep.subr.mxu0 0.0
        %1689 = vmatpush1.xpose.msra.mxu0 0.0
        %1690 = vmatprep.subr.mxu0 0.0
        %1691 = vmatpush1.xpose.msra.mxu0 0.0
        %1692 = vmatprep.subr.mxu0 0.0
        %1693 = vmatpush1.xpose.msra.mxu0 0.0
        %1694 = vmatprep.subr.mxu0 0.0
        %1695 = vmatpush1.xpose.msra.mxu0 0.0
        %1696 = vmatprep.subr.mxu0 0.0
        %1697 = vmatpush1.xpose.msra.mxu0 0.0
        %1698 = vmatprep.subr.mxu0 0.0
        %1699 = vmatpush1.xpose.msra.mxu0 0.0
        %1700 = vmatprep.subr.mxu0 0.0
        %1701 = vmatpush1.xpose.msra.mxu0 0.0
        %1702 = vmatprep.subr.mxu0 0.0
        %1703 = vmatpush1.xpose.msra.mxu0 0.0
        %1704 = vmatprep.subr.mxu0 0.0
        %1705 = vmatpush1.xpose.msra.mxu0 0.0
        %1706 = vmatprep.subr.mxu0 0.0
        %1707 = vmatpush1.xpose.msra.mxu0 0.0
        %1708 = vmatprep.subr.mxu0 0.0
        %1709 = vmatpush1.xpose.msra.mxu0 0.0
        %1710 = vmatprep.subr.mxu0 0.0
        %1711 = vmatpush1.xpose.msra.mxu0 0.0
        %1712 = vmatprep.subr.mxu0 0.0
        %1713 = vmatpush1.xpose.msra.mxu0 0.0
        %1714 = vmatprep.subr.mxu0 0.0
        %1715 = vmatpush1.xpose.msra.mxu0 0.0
        %1716 = vmatprep.subr.mxu0 0.0
        %1717 = vmatpush1.xpose.msra.mxu0 0.0
        %1718 = vmatprep.subr.mxu0 0.0
        %1719 = vmatpush1.xpose.msra.mxu0 0.0
        %1720 = vmatprep.subr.mxu0 0.0
        %1721 = vmatpush1.xpose.msra.mxu0 0.0
        %1722 = vmatprep.subr.mxu0 0.0
        %1723 = vmatpush1.xpose.msra.mxu0 0.0
        %1724 = vmatprep.subr.mxu0 0.0
        %1725 = vmatpush1.xpose.msra.mxu0 0.0
        %1726 = vmatprep.subr.mxu0 0.0
        %1727 = vmatpush1.xpose.msra.mxu0 0.0
        %1728 = vmatprep.subr.mxu0 0.0
        %1729 = vmatpush1.xpose.msra.mxu0 0.0
        %1730 = vmatprep.subr.mxu0 0.0
        %1731 = vmatpush1.xpose.msra.mxu0 0.0
        %1732 = vmatprep.subr.mxu0 0.0
        %1733 = vmatpush1.xpose.msra.mxu0 0.0
        %1734 = vmatprep.subr.mxu0 0.0
        %1735 = vmatpush1.xpose.msra.mxu0 0.0
        %1736 = vmatprep.subr.mxu0 0.0
        %1737 = vmatpush1.xpose.msra.mxu0 0.0
        %1738 = vmatprep.mubr.f32.mxu0 0.0
        %1739 = vmatmul.mubr.f32.gmra.mrb[0].mxu0 %v1668
        %v1740 = vpop.f32.mrb[0].mxu0
        %v1741 = vadd.f32 %v616, %v1740
        %v1742 = vpop.f32.mrb[0].mxu0
        %1743 = vdwg.mxu0
        %v1744 = vsel %vm697, %v1741, -inf
        %1745 = vmax.xlane.f32.xlu0 %v1744
        %v1746 = vpop.xlane.xlu0 %1745
        %v1747 = vsub.f32 %v1741, %v1746
        %v1748 = vmul.f32 %v1747, 1.442695
        %v1749 = vpow.pop %v1748
        %v1750 = vsel %vm697, %v1749, 0.0
        %1751 = vadd.xlane.f32.xlu0 %v1750
        %v1752 = vpop.xlane.xlu0 %1751
        %v1753 = vrcp.pop %v1752
        %v1754 = vmul.f32 %v1749, %v1753
        %1755 = vrot.lane.b32.xlu0 %v602, 64
        %v1756 = vpop.permute.xlu0 %1755
        %1757 = vrot.lane.b32.xlu0 %v608, 64
        %v1758 = vpop.permute.xlu0 %1757
        %v1762 = vsel %vm697, %v1754, 0
        %1764 = vmatprep.subr.mxu0 0.0
        %1765 = vmatpush1.msra.mxu0 %v1756
        %1766 = vmatprep.subr.mxu0 0.0
        %1767 = vmatpush1.msra.mxu0 %v1758
        %1768 = vmatprep.subr.mxu0 0.0
        %1769 = vmatpush1.msra.mxu0 0.0
        %1770 = vmatprep.subr.mxu0 0.0
        %1771 = vmatpush1.msra.mxu0 0.0
        %1772 = vmatprep.subr.mxu0 0.0
        %1773 = vmatpush1.msra.mxu0 0.0
        %1774 = vmatprep.subr.mxu0 0.0
        %1775 = vmatpush1.msra.mxu0 0.0
        %1776 = vmatprep.subr.mxu0 0.0
        %1777 = vmatpush1.msra.mxu0 0.0
        %1778 = vmatprep.subr.mxu0 0.0
        %1779 = vmatpush1.msra.mxu0 0.0
        %1780 = vmatprep.subr.mxu0 0.0
        %1781 = vmatpush1.msra.mxu0 0.0
        %1782 = vmatprep.subr.mxu0 0.0
        %1783 = vmatpush1.msra.mxu0 0.0
        %1784 = vmatprep.subr.mxu0 0.0
        %1785 = vmatpush1.msra.mxu0 0.0
        %1786 = vmatprep.subr.mxu0 0.0
        %1787 = vmatpush1.msra.mxu0 0.0
        %1788 = vmatprep.subr.mxu0 0.0
        %1789 = vmatpush1.msra.mxu0 0.0
        %1790 = vmatprep.subr.mxu0 0.0
        %1791 = vmatpush1.msra.mxu0 0.0
        %1792 = vmatprep.subr.mxu0 0.0
        %1793 = vmatpush1.msra.mxu0 0.0
        %1794 = vmatprep.subr.mxu0 0.0
        %1795 = vmatpush1.msra.mxu0 0.0
        %1796 = vmatprep.subr.mxu0 0.0
        %1797 = vmatpush1.msra.mxu0 0.0
        %1798 = vmatprep.subr.mxu0 0.0
        %1799 = vmatpush1.msra.mxu0 0.0
        %1800 = vmatprep.subr.mxu0 0.0
        %1801 = vmatpush1.msra.mxu0 0.0
        %1802 = vmatprep.subr.mxu0 0.0
        %1803 = vmatpush1.msra.mxu0 0.0
        %1804 = vmatprep.subr.mxu0 0.0
        %1805 = vmatpush1.msra.mxu0 0.0
        %1806 = vmatprep.subr.mxu0 0.0
        %1807 = vmatpush1.msra.mxu0 0.0
        %1808 = vmatprep.subr.mxu0 0.0
        %1809 = vmatpush1.msra.mxu0 0.0
        %1810 = vmatprep.subr.mxu0 0.0
        %1811 = vmatpush1.msra.mxu0 0.0
        %1812 = vmatprep.subr.mxu0 0.0
        %1813 = vmatpush1.msra.mxu0 0.0
        %1814 = vmatprep.subr.mxu0 0.0
        %1815 = vmatpush1.msra.mxu0 0.0
        %1816 = vmatprep.subr.mxu0 0.0
        %1817 = vmatpush1.msra.mxu0 0.0
        %1818 = vmatprep.subr.mxu0 0.0
        %1819 = vmatpush1.msra.mxu0 0.0
        %1820 = vmatprep.subr.mxu0 0.0
        %1821 = vmatpush1.msra.mxu0 0.0
        %1822 = vmatprep.subr.mxu0 0.0
        %1823 = vmatpush1.msra.mxu0 0.0
        %1824 = vmatprep.subr.mxu0 0.0
        %1825 = vmatpush1.msra.mxu0 0.0
        %1826 = vmatprep.subr.mxu0 0.0
        %1827 = vmatpush1.msra.mxu0 0.0
        %1828 = vmatprep.mubr.f32.mxu0 0.0
        %1829 = vmatmul.mubr.f32.gmra.mrb[0].mxu0 %v1762
        %v1830 = vpop.f32.mrb[0].mxu0
        %v1831 = vadd.f32 0.0, %v1830
        %v1832 = vpop.f32.mrb[0].mxu0
        %1833 = vdwg.mxu0
        %1835 = vrot.lane.b32.xlu0 %v1831, 64
        %v1836 = vpop.permute.xlu0 %1835
        %1838 = vst.msk [vmem:[#allocation2 + $0x8] sm:$0xff] %vm1139, %v1836
        %1839 = vrot.lane.b32.xlu0 %v433, 32
        %v1840 = vpop.permute.xlu0 %1839
        %1841 = vrot.lane.b32.xlu0 %v517, 32
        %v1842 = vpop.permute.xlu0 %1841
        %1843 = vrot.lane.b32.xlu0 %v523, 32
        %v1844 = vpop.permute.xlu0 %1843
        %v1845 = vsel %vm357, %v1840, 0
        %v1847 = vsel %vm357, %v1842, 0
        %v1849 = vsel %vm357, %v1844, 0
        %1851 = vmatprep.subr.mxu0 0.0
        %1852 = vmatpush1.xpose.msra.mxu0 %v1847
        %1853 = vmatprep.subr.mxu0 0.0
        %1854 = vmatpush1.xpose.msra.mxu0 %v1849
        %1855 = vmatprep.subr.mxu0 0.0
        %1856 = vmatpush1.xpose.msra.mxu0 0.0
        %1857 = vmatprep.subr.mxu0 0.0
        %1858 = vmatpush1.xpose.msra.mxu0 0.0
        %1859 = vmatprep.subr.mxu0 0.0
        %1860 = vmatpush1.xpose.msra.mxu0 0.0
        %1861 = vmatprep.subr.mxu0 0.0
        %1862 = vmatpush1.xpose.msra.mxu0 0.0
        %1863 = vmatprep.subr.mxu0 0.0
        %1864 = vmatpush1.xpose.msra.mxu0 0.0
        %1865 = vmatprep.subr.mxu0 0.0
        %1866 = vmatpush1.xpose.msra.mxu0 0.0
        %1867 = vmatprep.subr.mxu0 0.0
        %1868 = vmatpush1.xpose.msra.mxu0 0.0
        %1869 = vmatprep.subr.mxu0 0.0
        %1870 = vmatpush1.xpose.msra.mxu0 0.0
        %1871 = vmatprep.subr.mxu0 0.0
        %1872 = vmatpush1.xpose.msra.mxu0 0.0
        %1873 = vmatprep.subr.mxu0 0.0
        %1874 = vmatpush1.xpose.msra.mxu0 0.0
        %1875 = vmatprep.subr.mxu0 0.0
        %1876 = vmatpush1.xpose.msra.mxu0 0.0
        %1877 = vmatprep.subr.mxu0 0.0
        %1878 = vmatpush1.xpose.msra.mxu0 0.0
        %1879 = vmatprep.subr.mxu0 0.0
        %1880 = vmatpush1.xpose.msra.mxu0 0.0
        %1881 = vmatprep.subr.mxu0 0.0
        %1882 = vmatpush1.xpose.msra.mxu0 0.0
        %1883 = vmatprep.subr.mxu0 0.0
        %1884 = vmatpush1.xpose.msra.mxu0 0.0
        %1885 = vmatprep.subr.mxu0 0.0
        %1886 = vmatpush1.xpose.msra.mxu0 0.0
        %1887 = vmatprep.subr.mxu0 0.0
        %1888 = vmatpush1.xpose.msra.mxu0 0.0
        %1889 = vmatprep.subr.mxu0 0.0
        %1890 = vmatpush1.xpose.msra.mxu0 0.0
        %1891 = vmatprep.subr.mxu0 0.0
        %1892 = vmatpush1.xpose.msra.mxu0 0.0
        %1893 = vmatprep.subr.mxu0 0.0
        %1894 = vmatpush1.xpose.msra.mxu0 0.0
        %1895 = vmatprep.subr.mxu0 0.0
        %1896 = vmatpush1.xpose.msra.mxu0 0.0
        %1897 = vmatprep.subr.mxu0 0.0
        %1898 = vmatpush1.xpose.msra.mxu0 0.0
        %1899 = vmatprep.subr.mxu0 0.0
        %1900 = vmatpush1.xpose.msra.mxu0 0.0
        %1901 = vmatprep.subr.mxu0 0.0
        %1902 = vmatpush1.xpose.msra.mxu0 0.0
        %1903 = vmatprep.subr.mxu0 0.0
        %1904 = vmatpush1.xpose.msra.mxu0 0.0
        %1905 = vmatprep.subr.mxu0 0.0
        %1906 = vmatpush1.xpose.msra.mxu0 0.0
        %1907 = vmatprep.subr.mxu0 0.0
        %1908 = vmatpush1.xpose.msra.mxu0 0.0
        %1909 = vmatprep.subr.mxu0 0.0
        %1910 = vmatpush1.xpose.msra.mxu0 0.0
        %1911 = vmatprep.subr.mxu0 0.0
        %1912 = vmatpush1.xpose.msra.mxu0 0.0
        %1913 = vmatprep.subr.mxu0 0.0
        %1914 = vmatpush1.xpose.msra.mxu0 0.0
        %1915 = vmatprep.mubr.f32.mxu0 0.0
        %1916 = vmatmul.mubr.f32.gmra.mrb[0].mxu0 %v1845
        %v1917 = vpop.f32.mrb[0].mxu0
        %v1918 = vadd.f32 %v616, %v1917
        %v1919 = vpop.f32.mrb[0].mxu0
        %1920 = vdwg.mxu0
        %v1921 = vsel %vm697, %v1918, -inf
        %1922 = vmax.xlane.f32.xlu0 %v1921
        %v1923 = vpop.xlane.xlu0 %1922
        %v1924 = vsub.f32 %v1918, %v1923
        %v1925 = vmul.f32 %v1924, 1.442695
        %v1926 = vpow.pop %v1925
        %v1927 = vsel %vm697, %v1926, 0.0
        %1928 = vadd.xlane.f32.xlu0 %v1927
        %v1929 = vpop.xlane.xlu0 %1928
        %v1930 = vrcp.pop %v1929
        %v1931 = vmul.f32 %v1926, %v1930
        %1932 = vrot.lane.b32.xlu0 %v602, 32
        %v1933 = vpop.permute.xlu0 %1932
        %1934 = vrot.lane.b32.xlu0 %v608, 32
        %v1935 = vpop.permute.xlu0 %1934
        %v1939 = vsel %vm697, %v1931, 0
        %1941 = vmatprep.subr.mxu0 0.0
        %1942 = vmatpush1.msra.mxu0 %v1933
        %1943 = vmatprep.subr.mxu0 0.0
        %1944 = vmatpush1.msra.mxu0 %v1935
        %1945 = vmatprep.subr.mxu0 0.0
        %1946 = vmatpush1.msra.mxu0 0.0
        %1947 = vmatprep.subr.mxu0 0.0
        %1948 = vmatpush1.msra.mxu0 0.0
        %1949 = vmatprep.subr.mxu0 0.0
        %1950 = vmatpush1.msra.mxu0 0.0
        %1951 = vmatprep.subr.mxu0 0.0
        %1952 = vmatpush1.msra.mxu0 0.0
        %1953 = vmatprep.subr.mxu0 0.0
        %1954 = vmatpush1.msra.mxu0 0.0
        %1955 = vmatprep.subr.mxu0 0.0
        %1956 = vmatpush1.msra.mxu0 0.0
        %1957 = vmatprep.subr.mxu0 0.0
        %1958 = vmatpush1.msra.mxu0 0.0
        %1959 = vmatprep.subr.mxu0 0.0
        %1960 = vmatpush1.msra.mxu0 0.0
        %1961 = vmatprep.subr.mxu0 0.0
        %1962 = vmatpush1.msra.mxu0 0.0
        %1963 = vmatprep.subr.mxu0 0.0
        %1964 = vmatpush1.msra.mxu0 0.0
        %1965 = vmatprep.subr.mxu0 0.0
        %1966 = vmatpush1.msra.mxu0 0.0
        %1967 = vmatprep.subr.mxu0 0.0
        %1968 = vmatpush1.msra.mxu0 0.0
        %1969 = vmatprep.subr.mxu0 0.0
        %1970 = vmatpush1.msra.mxu0 0.0
        %1971 = vmatprep.subr.mxu0 0.0
        %1972 = vmatpush1.msra.mxu0 0.0
        %1973 = vmatprep.subr.mxu0 0.0
        %1974 = vmatpush1.msra.mxu0 0.0
        %1975 = vmatprep.subr.mxu0 0.0
        %1976 = vmatpush1.msra.mxu0 0.0
        %1977 = vmatprep.subr.mxu0 0.0
        %1978 = vmatpush1.msra.mxu0 0.0
        %1979 = vmatprep.subr.mxu0 0.0
        %1980 = vmatpush1.msra.mxu0 0.0
        %1981 = vmatprep.subr.mxu0 0.0
        %1982 = vmatpush1.msra.mxu0 0.0
        %1983 = vmatprep.subr.mxu0 0.0
        %1984 = vmatpush1.msra.mxu0 0.0
        %1985 = vmatprep.subr.mxu0 0.0
        %1986 = vmatpush1.msra.mxu0 0.0
        %1987 = vmatprep.subr.mxu0 0.0
        %1988 = vmatpush1.msra.mxu0 0.0
        %1989 = vmatprep.subr.mxu0 0.0
        %1990 = vmatpush1.msra.mxu0 0.0
        %1991 = vmatprep.subr.mxu0 0.0
        %1992 = vmatpush1.msra.mxu0 0.0
        %1993 = vmatprep.subr.mxu0 0.0
        %1994 = vmatpush1.msra.mxu0 0.0
        %1995 = vmatprep.subr.mxu0 0.0
        %1996 = vmatpush1.msra.mxu0 0.0
        %1997 = vmatprep.subr.mxu0 0.0
        %1998 = vmatpush1.msra.mxu0 0.0
        %1999 = vmatprep.subr.mxu0 0.0
        %2000 = vmatpush1.msra.mxu0 0.0
        %2001 = vmatprep.subr.mxu0 0.0
        %2002 = vmatpush1.msra.mxu0 0.0
        %2003 = vmatprep.subr.mxu0 0.0
        %2004 = vmatpush1.msra.mxu0 0.0
        %2005 = vmatprep.mubr.f32.mxu0 0.0
        %2006 = vmatmul.mubr.f32.gmra.mrb[0].mxu0 %v1939
        %v2007 = vpop.f32.mrb[0].mxu0
        %v2008 = vadd.f32 0.0, %v2007
        %v2009 = vpop.f32.mrb[0].mxu0
        %2010 = vdwg.mxu0
        %2012 = vrot.lane.b32.xlu0 %v2008, 96
        %v2013 = vpop.permute.xlu0 %2012
        %2015 = vst.msk [vmem:[#allocation2 + $0x8] sm:$0xff] %vm1317, %v2013
        %v2016 = vld [vmem:[#allocation2] sm:$0xff]
        %v2017 = vld [vmem:[#allocation2 + $0x8] sm:$0xff]
        %v2018 = vld [vmem:[%s6] sm:$0xff]
        %v2019 = vld [vmem:[%s6 + $0x8] sm:$0xff]
        %v2020 = vld [vmem:[%s6 + $0x10] sm:$0xff]
        %v2021 = vld [vmem:[%s6 + $0x18] sm:$0xff]
        %v2022 = vld [vmem:[%s6 + $0x20] sm:$0xff]
        %v2023 = vld [vmem:[%s6 + $0x28] sm:$0xff]
        %v2024 = vld [vmem:[%s6 + $0x30] sm:$0xff]
        %v2025 = vld [vmem:[%s6 + $0x38] sm:$0xff]
        %v2026 = vld [vmem:[%s6 + $0x40] sm:$0xff]
        %v2027 = vld [vmem:[%s6 + $0x48] sm:$0xff]
        %v2028 = vld [vmem:[%s6 + $0x50] sm:$0xff]
        %v2029 = vld [vmem:[%s6 + $0x58] sm:$0xff]
        %v2030 = vld [vmem:[%s6 + $0x60] sm:$0xff]
        %v2031 = vld [vmem:[%s6 + $0x68] sm:$0xff]
        %v2032 = vld [vmem:[%s6 + $0x70] sm:$0xff]
        %v2033 = vld [vmem:[%s6 + $0x78] sm:$0xff]
        %v2034 = vld [vmem:[%s6 + $0x80] sm:$0xff]
        %v2035 = vld [vmem:[%s6 + $0x88] sm:$0xff]
        %v2036 = vld [vmem:[%s6 + $0x90] sm:$0xff]
        %v2037 = vld [vmem:[%s6 + $0x98] sm:$0xff]
        %v2038 = vld [vmem:[%s6 + $0xa0] sm:$0xff]
        %v2039 = vld [vmem:[%s6 + $0xa8] sm:$0xff]
        %v2040 = vld [vmem:[%s6 + $0xb0] sm:$0xff]
        %v2041 = vld [vmem:[%s6 + $0xb8] sm:$0xff]
        %v2042 = vld [vmem:[%s6 + $0xc0] sm:$0xff]
        %v2043 = vld [vmem:[%s6 + $0xc8] sm:$0xff]
        %v2044 = vld [vmem:[%s6 + $0xd0] sm:$0xff]
        %v2045 = vld [vmem:[%s6 + $0xd8] sm:$0xff]
        %v2046 = vld [vmem:[%s6 + $0xe0] sm:$0xff]
        %v2047 = vld [vmem:[%s6 + $0xe8] sm:$0xff]
        %v2048 = vld [vmem:[%s6 + $0xf0] sm:$0xff]
        %v2049 = vld [vmem:[%s6 + $0xf8] sm:$0xff]
        %2050 = vmatprep.subr.mxu0 0.0
        %2051 = vmatpush1.msra.mxu0 %v2018
        %2052 = vmatprep.subr.mxu0 0.0
        %2053 = vmatpush1.msra.mxu0 %v2019
        %2054 = vmatprep.subr.mxu0 0.0
        %2055 = vmatpush1.msra.mxu0 %v2020
        %2056 = vmatprep.subr.mxu0 0.0
        %2057 = vmatpush1.msra.mxu0 %v2021
        %2058 = vmatprep.subr.mxu0 0.0
        %2059 = vmatpush1.msra.mxu0 %v2022
        %2060 = vmatprep.subr.mxu0 0.0
        %2061 = vmatpush1.msra.mxu0 %v2023
        %2062 = vmatprep.subr.mxu0 0.0
        %2063 = vmatpush1.msra.mxu0 %v2024
        %2064 = vmatprep.subr.mxu0 0.0
        %2065 = vmatpush1.msra.mxu0 %v2025
        %2066 = vmatprep.subr.mxu0 0.0
        %2067 = vmatpush1.msra.mxu0 %v2026
        %2068 = vmatprep.subr.mxu0 0.0
        %2069 = vmatpush1.msra.mxu0 %v2027
        %2070 = vmatprep.subr.mxu0 0.0
        %2071 = vmatpush1.msra.mxu0 %v2028
        %2072 = vmatprep.subr.mxu0 0.0
        %2073 = vmatpush1.msra.mxu0 %v2029
        %2074 = vmatprep.subr.mxu0 0.0
        %2075 = vmatpush1.msra.mxu0 %v2030
        %2076 = vmatprep.subr.mxu0 0.0
        %2077 = vmatpush1.msra.mxu0 %v2031
        %2078 = vmatprep.subr.mxu0 0.0
        %2079 = vmatpush1.msra.mxu0 %v2032
        %2080 = vmatprep.subr.mxu0 0.0
        %2081 = vmatpush1.msra.mxu0 %v2033
        %2082 = vmatprep.subr.mxu0 0.0
        %2083 = vmatpush1.msra.mxu0 %v2034
        %2084 = vmatprep.subr.mxu0 0.0
        %2085 = vmatpush1.msra.mxu0 %v2035
        %2086 = vmatprep.subr.mxu0 0.0
        %2087 = vmatpush1.msra.mxu0 %v2036
        %2088 = vmatprep.subr.mxu0 0.0
        %2089 = vmatpush1.msra.mxu0 %v2037
        %2090 = vmatprep.subr.mxu0 0.0
        %2091 = vmatpush1.msra.mxu0 %v2038
        %2092 = vmatprep.subr.mxu0 0.0
        %2093 = vmatpush1.msra.mxu0 %v2039
        %2094 = vmatprep.subr.mxu0 0.0
        %2095 = vmatpush1.msra.mxu0 %v2040
        %2096 = vmatprep.subr.mxu0 0.0
        %2097 = vmatpush1.msra.mxu0 %v2041
        %2098 = vmatprep.subr.mxu0 0.0
        %2099 = vmatpush1.msra.mxu0 %v2042
        %2100 = vmatprep.subr.mxu0 0.0
        %2101 = vmatpush1.msra.mxu0 %v2043
        %2102 = vmatprep.subr.mxu0 0.0
        %2103 = vmatpush1.msra.mxu0 %v2044
        %2104 = vmatprep.subr.mxu0 0.0
        %2105 = vmatpush1.msra.mxu0 %v2045
        %2106 = vmatprep.subr.mxu0 0.0
        %2107 = vmatpush1.msra.mxu0 %v2046
        %2108 = vmatprep.subr.mxu0 0.0
        %2109 = vmatpush1.msra.mxu0 %v2047
        %2110 = vmatprep.subr.mxu0 0.0
        %2111 = vmatpush1.msra.mxu0 %v2048
        %2112 = vmatprep.subr.mxu0 0.0
        %2113 = vmatpush1.msra.mxu0 %v2049
        %2114 = vmatprep.mubr.f32.mxu0 %v2017
        %2115 = vmatmul.mubr.f32.gmra.mrb[0].mxu0 %v2016
        %v2116 = vpop.f32.mrb[0].mxu0
        %v2117 = vadd.f32 %v345, %v2116
        %v2118 = vpop.f32.mrb[0].mxu0
        %2119 = vdwg.mxu0
        %v2120 = vld [vmem:[%s7] sm:$0x1]
        %s2121 = sld [smem:[#allocation3]]
        %v2122 = vstv %s2121
        %v2124 = vsel %vm357, %v2120, 0
        %v2127 = vsel %vm357, %v2117, 0
        %2129 = vmatprep.subr.mxu0 0.0
        %2130 = vmatpush1.xpose.msra.mxu0 %v2127
        %2131 = vmatprep.subr.mxu0 0.0
        %2132 = vmatpush1.xpose.msra.mxu0 0.0
        %2133 = vmatprep.subr.mxu0 0.0
        %2134 = vmatpush1.xpose.msra.mxu0 0.0
        %2135 = vmatprep.subr.mxu0 0.0
        %2136 = vmatpush1.xpose.msra.mxu0 0.0
        %2137 = vmatprep.subr.mxu0 0.0
        %2138 = vmatpush1.xpose.msra.mxu0 0.0
        %2139 = vmatprep.subr.mxu0 0.0
        %2140 = vmatpush1.xpose.msra.mxu0 0.0
        %2141 = vmatprep.subr.mxu0 0.0
        %2142 = vmatpush1.xpose.msra.mxu0 0.0
        %2143 = vmatprep.subr.mxu0 0.0
        %2144 = vmatpush1.xpose.msra.mxu0 0.0
        %2145 = vmatprep.subr.mxu0 0.0
        %2146 = vmatpush1.xpose.msra.mxu0 0.0
        %2147 = vmatprep.subr.mxu0 0.0
        %2148 = vmatpush1.xpose.msra.mxu0 0.0
        %2149 = vmatprep.subr.mxu0 0.0
        %2150 = vmatpush1.xpose.msra.mxu0 0.0
        %2151 = vmatprep.subr.mxu0 0.0
        %2152 = vmatpush1.xpose.msra.mxu0 0.0
        %2153 = vmatprep.subr.mxu0 0.0
        %2154 = vmatpush1.xpose.msra.mxu0 0.0
        %2155 = vmatprep.subr.mxu0 0.0
        %2156 = vmatpush1.xpose.msra.mxu0 0.0
        %2157 = vmatprep.subr.mxu0 0.0
        %2158 = vmatpush1.xpose.msra.mxu0 0.0
        %2159 = vmatprep.subr.mxu0 0.0
        %2160 = vmatpush1.xpose.msra.mxu0 0.0
        %2161 = vmatprep.subr.mxu0 0.0
        %2162 = vmatpush1.xpose.msra.mxu0 0.0
        %2163 = vmatprep.subr.mxu0 0.0
        %2164 = vmatpush1.xpose.msra.mxu0 0.0
        %2165 = vmatprep.subr.mxu0 0.0
        %2166 = vmatpush1.xpose.msra.mxu0 0.0
        %2167 = vmatprep.subr.mxu0 0.0
        %2168 = vmatpush1.xpose.msra.mxu0 0.0
        %2169 = vmatprep.subr.mxu0 0.0
        %2170 = vmatpush1.xpose.msra.mxu0 0.0
        %2171 = vmatprep.subr.mxu0 0.0
        %2172 = vmatpush1.xpose.msra.mxu0 0.0
        %2173 = vmatprep.subr.mxu0 0.0
        %2174 = vmatpush1.xpose.msra.mxu0 0.0
        %2175 = vmatprep.subr.mxu0 0.0
        %2176 = vmatpush1.xpose.msra.mxu0 0.0
        %2177 = vmatprep.subr.mxu0 0.0
        %2178 = vmatpush1.xpose.msra.mxu0 0.0
        %2179 = vmatprep.subr.mxu0 0.0
        %2180 = vmatpush1.xpose.msra.mxu0 0.0
        %2181 = vmatprep.subr.mxu0 0.0
        %2182 = vmatpush1.xpose.msra.mxu0 0.0
        %2183 = vmatprep.subr.mxu0 0.0
        %2184 = vmatpush1.xpose.msra.mxu0 0.0
        %2185 = vmatprep.subr.mxu0 0.0
        %2186 = vmatpush1.xpose.msra.mxu0 0.0
        %2187 = vmatprep.subr.mxu0 0.0
        %2188 = vmatpush1.xpose.msra.mxu0 0.0
        %2189 = vmatprep.subr.mxu0 0.0
        %2190 = vmatpush1.xpose.msra.mxu0 0.0
        %2191 = vmatprep.subr.mxu0 0.0
        %2192 = vmatpush1.xpose.msra.mxu0 0.0
        %2193 = vmatprep.mubr.f32.mxu0 0.0
        %2194 = vmatmul.mubr.f32.gmra.mrb[0].mxu0 %v2124
        %v2195 = vpop.f32.mrb[0].mxu0
        %v2196 = vadd.f32 %v2122, %v2195
        %v2197 = vpop.f32.mrb[0].mxu0
        %2198 = vdwg.mxu0
        %vm2199 = vcmask 57344
        %2200 = vst.msk [vmem:[%s336] sm:$0x1] %vm2199, %v2196
        %s2201 = sand.u32 %s231, 1
        %s2202 = scalar_lea.sflag [#allocation5], %s2201
        %s2203 = sand.u32 %s231, 1
        %s2204 = scalar_lea.vmem [#allocation4], %s2203
        // Predicated region
        $region57: #{tpu_custom_call.1} parent=55 // pred_check
          %p2205 = pneg %p241
        $region58: #{tpu_custom_call.1} parent=55 // pred_check_branch
          %2207 = sbr.rel (%p2205) target = $region60
        $region59: #{tpu_custom_call.1} parent=55 // pred_region
          %s2209 = ssub.s32 16, 16
          %2210 = vsyncadd %s2202, %s2209
          %s2211 = smul.addr %s24, 16
          %s2212 = scalar_lea.hbm %s9, %s2211
          %s2214 = sshll.u32 %s2204, 4
          %s2215 = int_to_ptr.vmem [resolvable:$true] %s2214
          %2217 = dma.vmem_to_hbm [thread:$0]  %s2215, 16, %s2212, %s2202
        $region60: #{tpu_custom_call.1} parent=55 // pred_fallthru
          _
      $region56: #{tpu_custom_call.1} parent=5 // pred_fallthru
        _
      %p2218 = scmp.le.s32.totalorder 2, %s19
      // Predicated region
      $region61: #{tpu_custom_call.1} parent=5 // pred_check
        %p2219 = pneg %p2218
      $region62: #{tpu_custom_call.1} parent=5 // pred_check_branch
        %2221 = sbr.rel (%p2219) target = $region64
      $region63: #{tpu_custom_call.1} parent=5 // pred_region
        %s2222 = ssub.s32 %s19, 2
        // Predicated region
        $region65: #{tpu_custom_call.1} parent=63 // pred_check
          %p2223 = pneg %p247
        $region66: #{tpu_custom_call.1} parent=63 // pred_check_branch
          %2225 = sbr.rel (%p2223) target = $region68
        $region67: #{tpu_custom_call.1} parent=63 // pred_region
          %s2226 = sand.u32 %s232, 1
          %s2227 = scalar_lea.sflag [#allocation5], %s2226
          %s2228 = sand.u32 %s232, 1
          %s2229 = scalar_lea.vmem [#allocation4], %s2228
          %2230 = dma.done %s2227, 16
        $region68: #{tpu_custom_call.1} parent=63 // pred_fallthru
          _
      $region64: #{tpu_custom_call.1} parent=5 // pred_fallthru
        _
    $region6: #{tpu_custom_call.1} parent=1 // loop_footer
      %s23 = sadd.s32 1, %s19
    $region7: #{tpu_custom_call.1} parent=1 // loop_footer_branch
      %18 = sbr.rel target = $region3
    $region8: #{tpu_custom_call.1} parent=1 // loop_exit
      _
    %2231 = vsyncpa [#allocation5], 1
    %s2232 = scalar_lea.sflag [#allocation5], 1
    %2233 = vsyncpa %s2232, 1

</llo_original>
